<compile_context>
chip_gen: v5e
topology: v5e:2x2
jax: 0.10.0
libtpu: 0.0.40
codegen_flags: <defaults>
</compile_context>

<pallas_src>
import math

import jax
import jax.numpy as jnp
from jax.experimental import pallas as pl
from jax.experimental.pallas import tpu as pltpu


def _make_kernel(valid_loc):
    """Build the kernel closed over the true (unpadded) location count."""

    def kernel(
        img_ref,    # (bt, L_pad, D_img)  compute dtype (f32 or bf16)
        q_ref,      # (bt, D_txt)         compute dtype
        w_i_ref,    # (D_img, 2H)         fused [fc | gate_fc] image weights
        b_i_ref,    # (1, 2H)             f32
        w_t_ref,    # (D_txt, 2H)         fused [fc | gate_fc] text weights
        b_t_ref,    # (1, 2H)             f32
        w_lc_ref,   # (1, H)              classifier weight row, f32
        att_ref,    # (bt, L_pad)         output attention weights (f32)
    ):
        bt, loc, d_img = img_ref.shape
        h = w_lc_ref.shape[-1]

        # Image-path GatedTanh: one fused (bt*loc, D_img) x (D_img, 2H) MXU matmul.
        # loc is padded to a multiple of 8 by the wrapper, so this flatten is a
        # layout-preserving view (no VMEM relayout copy).
        img = img_ref[...].reshape(bt * loc, d_img)
        img_lin = jnp.dot(img, w_i_ref[...], preferred_element_type=jnp.float32)
        img_lin = img_lin + b_i_ref[...]
        img_fa = jnp.tanh(img_lin[:, :h]) * jax.nn.sigmoid(img_lin[:, h:])   # (bt*loc, H) f32

        # Question-path GatedTanh: tiny M = bt matmul; free filler at mem-bound sizes
        # (hoist to a full-batch XLA matmul only if the bundle shows it binding).
        q_lin = jnp.dot(q_ref[...], w_t_ref[...], preferred_element_type=jnp.float32)
        q_lin = q_lin + b_t_ref[...]
        q_fa = jnp.tanh(q_lin[:, :h]) * jax.nn.sigmoid(q_lin[:, h:])         # (bt, H) f32

        # Folded H->1 classifier: raw[b, l] = img_fa[b, l, :] . (q_fa[b, :] * w_lc).
        # No (L, H) joint tensor, no width-1 MXU matmul. b_lc omitted (softmax-
        # invariant). TODO(synk): dropout(p=0.2) on the joint feature is identity
        # in inference mode; training would mask with pltpu.prng_random_bits.
        v = q_fa * w_lc_ref[...]                                              # (bt, H)
        raw = jnp.sum(img_fa.reshape(bt, loc, h) * v[:, None, :], axis=-1)    # (bt, L_pad)

        if valid_loc != loc:
            # Mask zero-padded locations out of the softmax.
            col = jax.lax.broadcasted_iota(jnp.int32, (bt, loc), 1)
            raw = jnp.where(col < valid_loc, raw, -jnp.inf)

        # Lane-major softmax over locations. Exact division (the approx EUP
        # reciprocal was the only numeric deviation flagged in review).
        m = jnp.max(raw, axis=-1, keepdims=True)
        e = jnp.exp(raw - m)
        att_ref[...] = (e / jnp.sum(e, axis=-1, keepdims=True)).astype(att_ref.dtype)

    return kernel


def _select_batch_tile(B, L_pad, D_img, itemsize, *, target_bytes=2 << 20, min_grid_steps=1):
    """Largest batch tile (multiple of 8 dividing B, or B itself) whose image block
    stays under ~target_bytes per grid step; optionally keep >= min_grid_steps."""
    cands = sorted({d for d in range(8, B + 1, 8) if B % d == 0} | {B})
    if min_grid_steps > 1:
        limited = [c for c in cands if B // c >= min_grid_steps]
        cands = limited or cands
    best = cands[0]
    for bt in cands:
        if bt * L_pad * D_img * itemsize <= target_bytes:
            best = bt
    return best


def project_attention(
    image_feat,            # (B, L, D_img)
    question_embedding,    # (B, D_txt)
    params,
    *,
    block_b=None,          # override batch tile; None -> auto-select
    compute_dtype=None,    # e.g. jnp.bfloat16 for the MXU matmuls (f32 accumulate)
    expand=False,          # True: materialize PyTorch's expand_as view
    single_buffer_weights=False,  # v7x: pl.Buffered(1) on constant weight specs
    min_grid_steps=1,      # v7x: set 2 so both TensorCores get work
):
    B, L, D_img = image_feat.shape
    _, D_txt = question_embedding.shape
    H = params["w_lc"].shape[0]

    cdt = jnp.dtype(compute_dtype) if compute_dtype is not None else image_feat.dtype
    itemsize = jnp.dtype(cdt).itemsize

    # Pad locations up to a multiple of 8 so the in-kernel flatten is free;
    # padded positions are masked to -inf before the softmax in the kernel.
    L_pad = L if L % 8 == 0 else ((L + 7) // 8) * 8
    img = image_feat.astype(cdt)
    if L_pad != L:
        img = jnp.pad(img, ((0, 0), (0, L_pad - L), (0, 0)))
    q = question_embedding.astype(cdt)

    # Fuse the paired GatedTanh weights -> one matmul per path; pre-transpose w_lc.
    # Matmul operands in compute dtype; biases / classifier row stay f32.
    w_i = jnp.concatenate([params["w_fi"], params["w_gi"]], axis=1).astype(cdt)   # (D_img, 2H)
    b_i = jnp.concatenate([params["b_fi"], params["b_gi"]], axis=1).astype(jnp.float32)
    w_t = jnp.concatenate([params["w_ft"], params["w_gt"]], axis=1).astype(cdt)   # (D_txt, 2H)
    b_t = jnp.concatenate([params["b_ft"], params["b_gt"]], axis=1).astype(jnp.float32)
    w_lc = params["w_lc"].T.astype(jnp.float32)                                   # (1, H)
    # b_lc intentionally dropped: softmax(x + c) == softmax(x).

    # Batch tile selection.
    if block_b is not None and B % block_b == 0 and (block_b % 8 == 0 or block_b == B):
        bt = block_b
    else:
        bt = _select_batch_tile(B, L_pad, D_img, itemsize, min_grid_steps=min_grid_steps)

    # VMEM budget for this tiling (double-buffered I/O, f32 intermediates).
    img_block = bt * L_pad * D_img * itemsize
    q_block = bt * D_txt * itemsize
    weight_bytes = (w_i.size + w_t.size) * itemsize + (b_i.size + b_t.size + w_lc.size) * 4
    interm_bytes = (bt * L_pad * 3 * H + bt * 3 * H) * 4
    out_block = bt * L_pad * 4
    wbuf = 1 if single_buffer_weights else 2
    vmem_est = 2 * img_block + 2 * q_block + wbuf * weight_bytes + interm_bytes + 2 * out_block
    vmem_limit = int(min(max(int(vmem_est * 1.5), 32 << 20), 64 << 20))  # v7x phys ceiling

    def const_spec(arr):
        nd = arr.ndim
        kwargs = {}
        if single_buffer_weights:
            # Constants never change across grid steps; single-buffer them (v7x VMEM).
            kwargs["pipeline_mode"] = pl.Buffered(1)
        return pl.BlockSpec(arr.shape, lambda b, _nd=nd: (0,) * _nd, **kwargs)

    cost = pl.CostEstimate(
        flops=int(2 * B * L_pad * D_img * 2 * H + 2 * B * D_txt * 2 * H + 2 * B * L_pad * H),
        transcendentals=int(3 * B * L_pad * H + 3 * B * H + B * L_pad),
        bytes_accessed=int((img.size + q.size) * itemsize + weight_bytes + B * L_pad * 4),
    )

    att = pl.pallas_call(
        _make_kernel(L),
        out_shape=jax.ShapeDtypeStruct((B, L_pad), jnp.float32),
        grid_spec=pltpu.PrefetchScalarGridSpec(
            num_scalar_prefetch=0,
            grid=(B // bt,),
            in_specs=[
                pl.BlockSpec((bt, L_pad, D_img), lambda b: (b, 0, 0)),
                pl.BlockSpec((bt, D_txt), lambda b: (b, 0)),
                const_spec(w_i), const_spec(b_i),
                const_spec(w_t), const_spec(b_t),
                const_spec(w_lc),
            ],
            out_specs=pl.BlockSpec((bt, L_pad), lambda b: (b, 0)),
        ),
        compiler_params=pltpu.CompilerParams(
            dimension_semantics=("parallel",),
            vmem_limit_bytes=vmem_limit,
        ),
        cost_estimate=cost,
    )(img, q, w_i, b_i, w_t, b_t, w_lc)

    if L_pad != L:
        att = att[:, :L]

    if expand:
        # PyTorch expand_as is a view; materializing it writes B*L*D_img to HBM.
        # Prefer expand=False and broadcast lazily at the consumer.
        return jnp.broadcast_to(att[:, :, None], image_feat.shape)
    return att


def init_params(key, image_feat_dim, txt_dim, hidden_size):
    """Deterministic init mimicking nn.Linear default: U(-1/sqrt(fan_in), 1/sqrt(fan_in))."""
    def linear(k, fan_in, fan_out):
        kw, kb = jax.random.split(k)
        bound = 1.0 / math.sqrt(fan_in)
        w = jax.random.uniform(kw, (fan_in, fan_out), jnp.float32, -bound, bound)
        b = jax.random.uniform(kb, (1, fan_out), jnp.float32, -bound, bound)
        return w, b

    keys = jax.random.split(key, 5)
    w_fi, b_fi = linear(keys[0], image_feat_dim, hidden_size)
    w_gi, b_gi = linear(keys[1], image_feat_dim, hidden_size)
    w_ft, b_ft = linear(keys[2], txt_dim, hidden_size)
    w_gt, b_gt = linear(keys[3], txt_dim, hidden_size)
    w_lc, b_lc = linear(keys[4], hidden_size, 1)
    return dict(
        w_fi=w_fi, b_fi=b_fi, w_gi=w_gi, b_gi=b_gi,
        w_ft=w_ft, b_ft=b_ft, w_gt=w_gt, b_gt=b_gt,
        w_lc=w_lc, b_lc=b_lc,
    )


def reference(image_feat, question_embedding, p):
    """Pure-JAX reference of the PyTorch forward (inference mode)."""
    def gated(x, w, b, wg, bg):
        return jnp.tanh(x @ w + b) * jax.nn.sigmoid(x @ wg + bg)

    img_fa = gated(image_feat, p["w_fi"], p["b_fi"][0], p["w_gi"], p["b_gi"][0])        # (B,L,H)
    q_fa = gated(question_embedding, p["w_ft"], p["b_ft"][0], p["w_gt"], p["b_gt"][0])  # (B,H)
    joint = img_fa * q_fa[:, None, :]
    raw = joint @ p["w_lc"] + p["b_lc"][0]                                              # (B,L,1)
    att = jax.nn.softmax(raw, axis=1)
    return jnp.broadcast_to(att, image_feat.shape)


if __name__ == "__main__":
    B, L, D_IMG, D_TXT, H = 16, 16, 128, 64, 128

    key = jax.random.PRNGKey(0)
    k_img, k_txt, k_params, k_img2, k_txt2 = jax.random.split(key, 5)

    image_feat = jax.random.normal(k_img, (B, L, D_IMG), jnp.float32)
    question_embedding = jax.random.normal(k_txt, (B, D_TXT), jnp.float32)
    params = init_params(k_params, D_IMG, D_TXT, H)

    ref_full = reference(image_feat, question_embedding, params)   # (B, L, D_img)
    ref_att = ref_full[:, :, 0]                                    # (B, L)

    # 1) f32 fidelity check: attention weights only (default expand=False).
    att = project_attention(image_feat, question_embedding, params)
    att = jax.block_until_ready(att)
    assert att.shape == (B, L)
    err_f32 = float(jnp.max(jnp.abs(att - ref_att)))
    assert jnp.allclose(att, ref_att, atol=2e-4, rtol=2e-4), (
        f"f32 mismatch vs. reference (max abs err {err_f32})")

    # 2) Full PyTorch-forward semantics (expand_as view materialized).
    out_full = project_attention(image_feat, question_embedding, params, expand=True)
    out_full = jax.block_until_ready(out_full)
    assert out_full.shape == image_feat.shape
    assert jnp.allclose(out_full, ref_full, atol=2e-4, rtol=2e-4)

    # 3) Non-multiple-of-8 location count exercises padding + -inf softmax mask.
    L2, B2 = 12, 8
    image_feat2 = jax.random.normal(k_img2, (B2, L2, D_IMG), jnp.float32)
    question2 = jax.random.normal(k_txt2, (B2, D_TXT), jnp.float32)
    ref_att2 = reference(image_feat2, question2, params)[:, :, 0]
    att2 = jax.block_until_ready(project_attention(image_feat2, question2, params))
    assert att2.shape == (B2, L2)
    assert jnp.allclose(att2, ref_att2, atol=2e-4, rtol=2e-4), "padded-L path mismatch"

    # 4) Production path: bf16 operands on the MXU, f32 accumulate + softmax.
    att_bf16 = project_attention(image_feat, question_embedding, params,
                                 compute_dtype=jnp.bfloat16)
    att_bf16 = jax.block_until_ready(att_bf16)
    assert jnp.allclose(jnp.sum(att_bf16, axis=1), jnp.ones((B,)), atol=1e-3)
    assert jnp.allclose(att_bf16, ref_att, atol=5e-2), "bf16 path diverged from reference"

    print("KERNEL_OK")
</pallas_src>

<mosaic_0001>
module attributes {stable_mosaic.version = 11 : i64} {
  func.func @kernel(%arg0: i32, %arg1: memref<16x16x128xf32, #tpu.memory_space<vmem>>, %arg2: memref<16x64xf32, #tpu.memory_space<vmem>>, %arg3: memref<128x256xf32, #tpu.memory_space<vmem>>, %arg4: memref<1x256xf32, #tpu.memory_space<vmem>>, %arg5: memref<64x256xf32, #tpu.memory_space<vmem>>, %arg6: memref<1x256xf32, #tpu.memory_space<vmem>>, %arg7: memref<1x128xf32, #tpu.memory_space<vmem>>, %arg8: memref<16x16xf32, #tpu.memory_space<vmem>>) attributes {dimension_semantics = [#tpu.dimension_semantics<parallel>], iteration_bounds = array<i64: 1>, scalar_prefetch = 0 : i64, scratch_operands = 0 : i64, tpu.core_type = #tpu.core_type<tc>, window_params = [{transform_indices = @transform_0, window_bounds = array<i64: 16, 16, 128>}, {transform_indices = @transform_1, window_bounds = array<i64: 16, 64>}, {pipeline_mode = #tpu.pipeline_mode<synchronous>, transform_indices = @transform_2, window_bounds = array<i64: 128, 256>}, {pipeline_mode = #tpu.pipeline_mode<synchronous>, transform_indices = @transform_3, window_bounds = array<i64: 1, 256>}, {pipeline_mode = #tpu.pipeline_mode<synchronous>, transform_indices = @transform_4, window_bounds = array<i64: 64, 256>}, {pipeline_mode = #tpu.pipeline_mode<synchronous>, transform_indices = @transform_5, window_bounds = array<i64: 1, 256>}, {pipeline_mode = #tpu.pipeline_mode<synchronous>, transform_indices = @transform_6, window_bounds = array<i64: 1, 128>}, {transform_indices = @transform_7, window_bounds = array<i64: 16, 16>}]} {
    %c0 = arith.constant 0 : index
    %c0_0 = arith.constant 0 : index
    %c0_1 = arith.constant 0 : index
    %0 = vector.load %arg1[%c0, %c0_0, %c0_1] : memref<16x16x128xf32, #tpu.memory_space<vmem>>, vector<16x16x128xf32>
    %1 = vector.shape_cast %0 : vector<16x16x128xf32> to vector<256x128xf32>
    %c0_2 = arith.constant 0 : index
    %c0_3 = arith.constant 0 : index
    %2 = vector.load %arg3[%c0_2, %c0_3] : memref<128x256xf32, #tpu.memory_space<vmem>>, vector<128x256xf32>
    %cst = arith.constant dense<0.000000e+00> : vector<256x256xf32>
    %3 = tpu.matmul %1, %2, %cst {dimension_numbers = #tpu.dot_dimension_numbers<[1], [0], [0], [1], [0, 0, 1, 1], [], []>} : vector<256x128xf32>, vector<128x256xf32>, vector<256x256xf32> -> vector<256x256xf32>
    %c0_4 = arith.constant 0 : index
    %c0_5 = arith.constant 0 : index
    %4 = vector.load %arg4[%c0_4, %c0_5] : memref<1x256xf32, #tpu.memory_space<vmem>>, vector<1x256xf32>
    %5 = vector.broadcast %4 : vector<1x256xf32> to vector<256x256xf32>
    %6 = arith.addf %3, %5 : vector<256x256xf32>
    %7 = vector.extract_strided_slice %6 {offsets = [0, 0], sizes = [256, 128], strides = [1, 1]} : vector<256x256xf32> to vector<256x128xf32>
    %8 = math.tanh %7 : vector<256x128xf32>
    %9 = vector.extract_strided_slice %6 {offsets = [0, 128], sizes = [256, 128], strides = [1, 1]} : vector<256x256xf32> to vector<256x128xf32>
    %10 = arith.negf %9 : vector<256x128xf32>
    %11 = math.exp %10 : vector<256x128xf32>
    %cst_6 = arith.constant 1.000000e+00 : f32
    %12 = vector.broadcast %cst_6 : f32 to vector<256x128xf32>
    %13 = arith.addf %12, %11 : vector<256x128xf32>
    %14 = arith.divf %12, %13 : vector<256x128xf32>
    %15 = arith.mulf %8, %14 : vector<256x128xf32>
    %c0_7 = arith.constant 0 : index
    %c0_8 = arith.constant 0 : index
    %16 = vector.load %arg2[%c0_7, %c0_8] : memref<16x64xf32, #tpu.memory_space<vmem>>, vector<16x64xf32>
    %c0_9 = arith.constant 0 : index
    %c0_10 = arith.constant 0 : index
    %17 = vector.load %arg5[%c0_9, %c0_10] : memref<64x256xf32, #tpu.memory_space<vmem>>, vector<64x256xf32>
    %cst_11 = arith.constant dense<0.000000e+00> : vector<16x256xf32>
    %18 = tpu.matmul %16, %17, %cst_11 {dimension_numbers = #tpu.dot_dimension_numbers<[1], [0], [0], [1], [0, 0, 1, 1], [], []>} : vector<16x64xf32>, vector<64x256xf32>, vector<16x256xf32> -> vector<16x256xf32>
    %c0_12 = arith.constant 0 : index
    %c0_13 = arith.constant 0 : index
    %19 = vector.load %arg6[%c0_12, %c0_13] : memref<1x256xf32, #tpu.memory_space<vmem>>, vector<1x256xf32>
    %20 = vector.broadcast %19 : vector<1x256xf32> to vector<16x256xf32>
    %21 = arith.addf %18, %20 : vector<16x256xf32>
    %22 = vector.extract_strided_slice %21 {offsets = [0, 0], sizes = [16, 128], strides = [1, 1]} : vector<16x256xf32> to vector<16x128xf32>
    %23 = math.tanh %22 : vector<16x128xf32>
    %24 = vector.extract_strided_slice %21 {offsets = [0, 128], sizes = [16, 128], strides = [1, 1]} : vector<16x256xf32> to vector<16x128xf32>
    %25 = arith.negf %24 : vector<16x128xf32>
    %26 = math.exp %25 : vector<16x128xf32>
    %cst_14 = arith.constant 1.000000e+00 : f32
    %27 = vector.broadcast %cst_14 : f32 to vector<16x128xf32>
    %28 = arith.addf %27, %26 : vector<16x128xf32>
    %29 = arith.divf %27, %28 : vector<16x128xf32>
    %30 = arith.mulf %23, %29 : vector<16x128xf32>
    %c0_15 = arith.constant 0 : index
    %c0_16 = arith.constant 0 : index
    %31 = vector.load %arg7[%c0_15, %c0_16] : memref<1x128xf32, #tpu.memory_space<vmem>>, vector<1x128xf32>
    %32 = vector.broadcast %31 : vector<1x128xf32> to vector<16x128xf32>
    %33 = arith.mulf %30, %32 : vector<16x128xf32>
    %34 = vector.shape_cast %15 : vector<256x128xf32> to vector<16x16x128xf32>
    %35 = vector.shape_cast %33 : vector<16x128xf32> to vector<16x1x128xf32>
    %36 = vector.broadcast %35 : vector<16x1x128xf32> to vector<16x16x128xf32>
    %37 = arith.mulf %34, %36 : vector<16x16x128xf32>
    %cst_17 = arith.constant dense<0.000000e+00> : vector<16x16xf32>
    %38 = vector.multi_reduction <add>, %37, %cst_17 [2] : vector<16x16x128xf32> to vector<16x16xf32>
    %cst_18 = arith.constant dense<0xFF800000> : vector<16xf32>
    %39 = vector.multi_reduction <maximumf>, %38, %cst_18 [1] : vector<16x16xf32> to vector<16xf32>
    %40 = vector.shape_cast %39 : vector<16xf32> to vector<16x1xf32>
    %41 = vector.broadcast %40 : vector<16x1xf32> to vector<16x16xf32>
    %42 = arith.subf %38, %41 : vector<16x16xf32>
    %43 = math.exp %42 : vector<16x16xf32>
    %cst_19 = arith.constant dense<0.000000e+00> : vector<16xf32>
    %44 = vector.multi_reduction <add>, %43, %cst_19 [1] : vector<16x16xf32> to vector<16xf32>
    %45 = vector.shape_cast %44 : vector<16xf32> to vector<16x1xf32>
    %46 = vector.broadcast %45 : vector<16x1xf32> to vector<16x16xf32>
    %47 = arith.divf %43, %46 : vector<16x16xf32>
    %c0_20 = arith.constant 0 : index
    %c0_21 = arith.constant 0 : index
    %48 = vector.load %arg8[%c0_20, %c0_21] : memref<16x16xf32, #tpu.memory_space<vmem>>, vector<16x16xf32>
    tpu.vector_store %arg8[%c0_20, %c0_21], %47 {strides = array<i32>} : memref<16x16xf32, #tpu.memory_space<vmem>>, vector<16x16xf32>,
    return
  }
  func.func @transform_0(%arg0: i32) -> (i32, i32, i32) {
    %c0_i32 = arith.constant 0 : i32
    %c0_i32_0 = arith.constant 0 : i32
    %c0_i32_1 = arith.constant 0 : i32
    return %arg0, %c0_i32, %c0_i32_0 : i32, i32, i32
  }
  func.func @transform_1(%arg0: i32) -> (i32, i32) {
    %c0_i32 = arith.constant 0 : i32
    %c0_i32_0 = arith.constant 0 : i32
    return %arg0, %c0_i32 : i32, i32
  }
  func.func @transform_2(%arg0: i32) -> (i32, i32) {
    %c0_i32 = arith.constant 0 : i32
    %c0_i32_0 = arith.constant 0 : i32
    %c0_i32_1 = arith.constant 0 : i32
    return %c0_i32, %c0_i32_0 : i32, i32
  }
  func.func @transform_3(%arg0: i32) -> (i32, i32) {
    %c0_i32 = arith.constant 0 : i32
    %c0_i32_0 = arith.constant 0 : i32
    %c0_i32_1 = arith.constant 0 : i32
    return %c0_i32, %c0_i32_0 : i32, i32
  }
  func.func @transform_4(%arg0: i32) -> (i32, i32) {
    %c0_i32 = arith.constant 0 : i32
    %c0_i32_0 = arith.constant 0 : i32
    %c0_i32_1 = arith.constant 0 : i32
    return %c0_i32, %c0_i32_0 : i32, i32
  }
  func.func @transform_5(%arg0: i32) -> (i32, i32) {
    %c0_i32 = arith.constant 0 : i32
    %c0_i32_0 = arith.constant 0 : i32
    %c0_i32_1 = arith.constant 0 : i32
    return %c0_i32, %c0_i32_0 : i32, i32
  }
  func.func @transform_6(%arg0: i32) -> (i32, i32) {
    %c0_i32 = arith.constant 0 : i32
    %c0_i32_0 = arith.constant 0 : i32
    %c0_i32_1 = arith.constant 0 : i32
    return %c0_i32, %c0_i32_0 : i32, i32
  }
  func.func @transform_7(%arg0: i32) -> (i32, i32) {
    %c0_i32 = arith.constant 0 : i32
    %c0_i32_0 = arith.constant 0 : i32
    return %arg0, %c0_i32 : i32, i32
  }
}

</mosaic_0001>

<llo_original>
// kernel: tpu_custom_call.1
$region0: #{tpu_custom_call.1}
  #allocation0 [shape = 'u32[]', space=smem, size = 0x4, offset = 0x4, fixed_abs, tag = 'smem constant byte address 0x4 - core index']
  #allocation1 [shape = 'u32[72,128]{1,0:T(1,128)}', space=vmem, size = 0x9000, scoped, tag = 'internal scratch']
  %s0 = inlined_call_operand.hbm [shape: f32[16,16,128], index: 0, kind: input, shape index: {}]
  %s1 = inlined_call_operand.hbm [shape: f32[16,64], index: 1, kind: input, shape index: {}]
  %s2 = inlined_call_operand.hbm [shape: f32[128,256], index: 2, kind: input, shape index: {}]
  %s3 = inlined_call_operand.vmem [shape: f32[1,256], index: 3, kind: input, shape index: {}]
  %s4 = inlined_call_operand.hbm [shape: f32[64,256], index: 4, kind: input, shape index: {}]
  %s5 = inlined_call_operand.vmem [shape: f32[1,256], index: 5, kind: input, shape index: {}]
  %s6 = inlined_call_operand.vmem [shape: f32[1,128], index: 6, kind: input, shape index: {}]
  %s7 = inlined_call_operand.hbm [shape: f32[16,16], index: 7, kind: output, shape index: {}]
  %s8 = sld [smem:[#allocation0]]
  $region54: #{tpu_custom_call.1} parent=0
    _
  %s10 = ssub.s32 1, %s8
  %s11 = scalar_select 0, %s10, %s8
  $region1: #{tpu_custom_call.1} parent=0
    #allocation2 [shape = 'u8[131072]{0}', space=vmem, size = 0x20000, scoped, tag = 'input window, operand 0, single buffered']
    #allocation3 [shape = 's32[1]{0}', space=sflag, size = 0x4, scoped, tag = 'scoped memory for tpu_custom_call.1']
    #allocation4 [shape = 's32[1]{0}', space=sflag, size = 0x4, scoped, tag = 'scoped memory for tpu_custom_call.1']
    #allocation5 [shape = 'u8[8192]{0}', space=vmem, size = 0x2000, scoped, tag = 'input window, operand 1, single buffered']
    #allocation6 [shape = 's32[1]{0}', space=sflag, size = 0x4, scoped, tag = 'scoped memory for tpu_custom_call.1']
    #allocation7 [shape = 'u8[131072]{0}', space=vmem, size = 0x20000, scoped, tag = 'input window, operand 2, single buffered']
    #allocation8 [shape = 'u8[65536]{0}', space=vmem, size = 0x10000, scoped, tag = 'input window, operand 4, single buffered']
    #allocation9 [shape = 's32[1]{0}', space=sflag, size = 0x4, scoped, tag = 'scoped memory for tpu_custom_call.1']
    #allocation10 [shape = 'u8[8192]{0}', space=vmem, size = 0x2000, scoped, tag = 'output window, operand 0, single buffered']
    %12 = vsyncpa [#allocation3], 0
    %13 = vsyncpa [#allocation6], 0
    %14 = vsyncpa [#allocation9], 0
    %15 = vsyncpa [#allocation4], 0
    // Predicated region
    $region2: #{tpu_custom_call.1} parent=1 // pred_check
      _
    $region3: #{tpu_custom_call.1} parent=1 // pred_check_branch
      %17 = sbr.rel (0) target = $region5
    $region4: #{tpu_custom_call.1} parent=1 // pred_region
      %19 = vsyncadd [#allocation3], 0
      %s20 = sshll.u32 %s0, 4
      %s21 = int_to_ptr.hbm [resolvable:$true] %s20
      %s22 = sshll.u32 [#allocation2], 4
      %s23 = int_to_ptr.vmem [resolvable:$true] %s22
      %28 = dma.hbm_to_vmem [thread:$0]  %s21, 4096, %s23, [#allocation3], 128, 128, 8
    $region5: #{tpu_custom_call.1} parent=1 // pred_fallthru
      _
    // Predicated region
    $region6: #{tpu_custom_call.1} parent=1 // pred_check
      _
    $region7: #{tpu_custom_call.1} parent=1 // pred_check_branch
      %30 = sbr.rel (0) target = $region9
    $region8: #{tpu_custom_call.1} parent=1 // pred_region
      %32 = vsyncadd [#allocation6], 0
      %s33 = sshll.u32 %s1, 4
      %s34 = int_to_ptr.hbm [resolvable:$true] %s33
      %s35 = sshll.u32 [#allocation5], 4
      %s36 = int_to_ptr.vmem [resolvable:$true] %s35
      %41 = dma.hbm_to_vmem [thread:$0]  %s34, 256, %s36, [#allocation6], 128, 128, 8
    $region9: #{tpu_custom_call.1} parent=1 // pred_fallthru
      _
    // Predicated region
    $region10: #{tpu_custom_call.1} parent=1 // pred_check
      _
    $region11: #{tpu_custom_call.1} parent=1 // pred_check_branch
      %43 = sbr.rel (0) target = $region13
    $region12: #{tpu_custom_call.1} parent=1 // pred_region
      %45 = vsyncadd [#allocation6], 0
      %s46 = sshll.u32 %s2, 4
      %s47 = int_to_ptr.hbm [resolvable:$true] %s46
      %s48 = sshll.u32 [#allocation7], 4
      %s49 = int_to_ptr.vmem [resolvable:$true] %s48
      %54 = dma.hbm_to_vmem [thread:$0]  %s47, 4096, %s49, [#allocation6], 256, 256, 16
    $region13: #{tpu_custom_call.1} parent=1 // pred_fallthru
      _
    // Predicated region
    $region14: #{tpu_custom_call.1} parent=1 // pred_check
      _
    $region15: #{tpu_custom_call.1} parent=1 // pred_check_branch
      %56 = sbr.rel (0) target = $region17
    $region16: #{tpu_custom_call.1} parent=1 // pred_region
      _
    $region17: #{tpu_custom_call.1} parent=1 // pred_fallthru
      _
    // Predicated region
    $region18: #{tpu_custom_call.1} parent=1 // pred_check
      _
    $region19: #{tpu_custom_call.1} parent=1 // pred_check_branch
      %58 = sbr.rel (0) target = $region21
    $region20: #{tpu_custom_call.1} parent=1 // pred_region
      %60 = vsyncadd [#allocation9], 0
      %s61 = sshll.u32 %s4, 4
      %s62 = int_to_ptr.hbm [resolvable:$true] %s61
      %s63 = sshll.u32 [#allocation8], 4
      %s64 = int_to_ptr.vmem [resolvable:$true] %s63
      %69 = dma.hbm_to_vmem [thread:$0]  %s62, 2048, %s64, [#allocation9], 256, 256, 16
    $region21: #{tpu_custom_call.1} parent=1 // pred_fallthru
      _
    // Predicated region
    $region22: #{tpu_custom_call.1} parent=1 // pred_check
      _
    $region23: #{tpu_custom_call.1} parent=1 // pred_check_branch
      %71 = sbr.rel (0) target = $region25
    $region24: #{tpu_custom_call.1} parent=1 // pred_region
      _
    $region25: #{tpu_custom_call.1} parent=1 // pred_fallthru
      _
    // Predicated region
    $region26: #{tpu_custom_call.1} parent=1 // pred_check
      _
    $region27: #{tpu_custom_call.1} parent=1 // pred_check_branch
      %73 = sbr.rel (0) target = $region29
    $region28: #{tpu_custom_call.1} parent=1 // pred_region
      _
    $region29: #{tpu_custom_call.1} parent=1 // pred_fallthru
      _
    // Predicated region
    $region30: #{tpu_custom_call.1} parent=1 // pred_check
      _
    $region31: #{tpu_custom_call.1} parent=1 // pred_check_branch
      %75 = sbr.rel (0) target = $region33
    $region32: #{tpu_custom_call.1} parent=1 // pred_region
      %77 = dma.done [#allocation3], 4096
    $region33: #{tpu_custom_call.1} parent=1 // pred_fallthru
      _
    // Predicated region
    $region34: #{tpu_custom_call.1} parent=1 // pred_check
      _
    $region35: #{tpu_custom_call.1} parent=1 // pred_check_branch
      %79 = sbr.rel (0) target = $region37
    $region36: #{tpu_custom_call.1} parent=1 // pred_region
      %81 = dma.done [#allocation6], 256
    $region37: #{tpu_custom_call.1} parent=1 // pred_fallthru
      _
    // Predicated region
    $region38: #{tpu_custom_call.1} parent=1 // pred_check
      _
    $region39: #{tpu_custom_call.1} parent=1 // pred_check_branch
      %83 = sbr.rel (0) target = $region41
    $region40: #{tpu_custom_call.1} parent=1 // pred_region
      %85 = dma.done [#allocation6], 4096
    $region41: #{tpu_custom_call.1} parent=1 // pred_fallthru
      _
    // Predicated region
    $region42: #{tpu_custom_call.1} parent=1 // pred_check
      _
    $region43: #{tpu_custom_call.1} parent=1 // pred_check_branch
      %87 = sbr.rel (0) target = $region45
    $region44: #{tpu_custom_call.1} parent=1 // pred_region
      %89 = dma.done [#allocation9], 2048
    $region45: #{tpu_custom_call.1} parent=1 // pred_fallthru
      _
    %v90 = vld [vmem:[#allocation2] sm:$0xff]
    %v91 = vld [vmem:[#allocation2 + $0x8] sm:$0xff]
    %v92 = vld [vmem:[#allocation2 + $0x10] sm:$0xff]
    %v93 = vld [vmem:[#allocation2 + $0x18] sm:$0xff]
    %v94 = vld [vmem:[#allocation2 + $0x20] sm:$0xff]
    %v95 = vld [vmem:[#allocation2 + $0x28] sm:$0xff]
    %v96 = vld [vmem:[#allocation2 + $0x30] sm:$0xff]
    %v97 = vld [vmem:[#allocation2 + $0x38] sm:$0xff]
    %v98 = vld [vmem:[#allocation2 + $0x40] sm:$0xff]
    %v99 = vld [vmem:[#allocation2 + $0x48] sm:$0xff]
    %v100 = vld [vmem:[#allocation2 + $0x50] sm:$0xff]
    %v101 = vld [vmem:[#allocation2 + $0x58] sm:$0xff]
    %v102 = vld [vmem:[#allocation2 + $0x60] sm:$0xff]
    %v103 = vld [vmem:[#allocation2 + $0x68] sm:$0xff]
    %v104 = vld [vmem:[#allocation2 + $0x70] sm:$0xff]
    %v105 = vld [vmem:[#allocation2 + $0x78] sm:$0xff]
    %v106 = vld [vmem:[#allocation2 + $0x80] sm:$0xff]
    %v107 = vld [vmem:[#allocation2 + $0x88] sm:$0xff]
    %v108 = vld [vmem:[#allocation2 + $0x90] sm:$0xff]
    %v109 = vld [vmem:[#allocation2 + $0x98] sm:$0xff]
    %v110 = vld [vmem:[#allocation2 + $0xa0] sm:$0xff]
    %v111 = vld [vmem:[#allocation2 + $0xa8] sm:$0xff]
    %v112 = vld [vmem:[#allocation2 + $0xb0] sm:$0xff]
    %v113 = vld [vmem:[#allocation2 + $0xb8] sm:$0xff]
    %v114 = vld [vmem:[#allocation2 + $0xc0] sm:$0xff]
    %v115 = vld [vmem:[#allocation2 + $0xc8] sm:$0xff]
    %v116 = vld [vmem:[#allocation2 + $0xd0] sm:$0xff]
    %v117 = vld [vmem:[#allocation2 + $0xd8] sm:$0xff]
    %v118 = vld [vmem:[#allocation2 + $0xe0] sm:$0xff]
    %v119 = vld [vmem:[#allocation2 + $0xe8] sm:$0xff]
    %v120 = vld [vmem:[#allocation2 + $0xf0] sm:$0xff]
    %v121 = vld [vmem:[#allocation2 + $0xf8] sm:$0xff]
    %v122 = vld [vmem:[#allocation7] sm:$0xff]
    %v123 = vld [vmem:[#allocation7 + $0x8] sm:$0xff]
    %v124 = vld [vmem:[#allocation7 + $0x10] sm:$0xff]
    %v125 = vld [vmem:[#allocation7 + $0x18] sm:$0xff]
    %v126 = vld [vmem:[#allocation7 + $0x20] sm:$0xff]
    %v127 = vld [vmem:[#allocation7 + $0x28] sm:$0xff]
    %v128 = vld [vmem:[#allocation7 + $0x30] sm:$0xff]
    %v129 = vld [vmem:[#allocation7 + $0x38] sm:$0xff]
    %v130 = vld [vmem:[#allocation7 + $0x40] sm:$0xff]
    %v131 = vld [vmem:[#allocation7 + $0x48] sm:$0xff]
    %v132 = vld [vmem:[#allocation7 + $0x50] sm:$0xff]
    %v133 = vld [vmem:[#allocation7 + $0x58] sm:$0xff]
    %v134 = vld [vmem:[#allocation7 + $0x60] sm:$0xff]
    %v135 = vld [vmem:[#allocation7 + $0x68] sm:$0xff]
    %v136 = vld [vmem:[#allocation7 + $0x70] sm:$0xff]
    %v137 = vld [vmem:[#allocation7 + $0x78] sm:$0xff]
    %v138 = vld [vmem:[#allocation7 + $0x80] sm:$0xff]
    %v139 = vld [vmem:[#allocation7 + $0x88] sm:$0xff]
    %v140 = vld [vmem:[#allocation7 + $0x90] sm:$0xff]
    %v141 = vld [vmem:[#allocation7 + $0x98] sm:$0xff]
    %v142 = vld [vmem:[#allocation7 + $0xa0] sm:$0xff]
    %v143 = vld [vmem:[#allocation7 + $0xa8] sm:$0xff]
    %v144 = vld [vmem:[#allocation7 + $0xb0] sm:$0xff]
    %v145 = vld [vmem:[#allocation7 + $0xb8] sm:$0xff]
    %v146 = vld [vmem:[#allocation7 + $0xc0] sm:$0xff]
    %v147 = vld [vmem:[#allocation7 + $0xc8] sm:$0xff]
    %v148 = vld [vmem:[#allocation7 + $0xd0] sm:$0xff]
    %v149 = vld [vmem:[#allocation7 + $0xd8] sm:$0xff]
    %v150 = vld [vmem:[#allocation7 + $0xe0] sm:$0xff]
    %v151 = vld [vmem:[#allocation7 + $0xe8] sm:$0xff]
    %v152 = vld [vmem:[#allocation7 + $0xf0] sm:$0xff]
    %v153 = vld [vmem:[#allocation7 + $0xf8] sm:$0xff]
    %v154 = vld [vmem:[%s3] sm:$0x3]
    %v156 = vperm.slane %v154, 0
    %v157 = vperm.slane %v154, 1
    %160 = vmatpush.msra.mxu0 %v152
    %161 = vmatpush.msra.mxu0 %v150
    %162 = vmatpush.msra.mxu0 %v148
    %163 = vmatpush.msra.mxu0 %v146
    %164 = vmatpush.msra.mxu0 %v144
    %165 = vmatpush.msra.mxu0 %v142
    %166 = vmatpush.msra.mxu0 %v140
    %167 = vmatpush.msra.mxu0 %v138
    %168 = vmatpush.msra.mxu0 %v136
    %169 = vmatpush.msra.mxu0 %v134
    %170 = vmatpush.msra.mxu0 %v132
    %171 = vmatpush.msra.mxu0 %v130
    %172 = vmatpush.msra.mxu0 %v128
    %173 = vmatpush.msra.mxu0 %v126
    %174 = vmatpush.msra.mxu0 %v124
    %175 = vmatpush.msra.mxu0 %v122
    %176 = vmatmul.f32.gmra.mxu0 %v90
    %v177 = vpop.f32.mrf.mxu0
    %v178 = vadd.f32 %v156, %v177
    %179 = vmatmul.f32.gmra.mxu0 %v91
    %v180 = vpop.f32.mrf.mxu0
    %v181 = vadd.f32 %v156, %v180
    %182 = vmatmul.f32.gmra.mxu0 %v92
    %v183 = vpop.f32.mrf.mxu0
    %v184 = vadd.f32 %v156, %v183
    %185 = vmatmul.f32.gmra.mxu0 %v93
    %v186 = vpop.f32.mrf.mxu0
    %v187 = vadd.f32 %v156, %v186
    %188 = vmatmul.f32.gmra.mxu0 %v94
    %v189 = vpop.f32.mrf.mxu0
    %v190 = vadd.f32 %v156, %v189
    %191 = vmatmul.f32.gmra.mxu0 %v95
    %v192 = vpop.f32.mrf.mxu0
    %v193 = vadd.f32 %v156, %v192
    %194 = vmatmul.f32.gmra.mxu0 %v96
    %v195 = vpop.f32.mrf.mxu0
    %v196 = vadd.f32 %v156, %v195
    %197 = vmatmul.f32.gmra.mxu0 %v97
    %v198 = vpop.f32.mrf.mxu0
    %v199 = vadd.f32 %v156, %v198
    %200 = vmatmul.f32.gmra.mxu0 %v98
    %v201 = vpop.f32.mrf.mxu0
    %v202 = vadd.f32 %v156, %v201
    %203 = vmatmul.f32.gmra.mxu0 %v99
    %v204 = vpop.f32.mrf.mxu0
    %v205 = vadd.f32 %v156, %v204
    %206 = vmatmul.f32.gmra.mxu0 %v100
    %v207 = vpop.f32.mrf.mxu0
    %v208 = vadd.f32 %v156, %v207
    %209 = vmatmul.f32.gmra.mxu0 %v101
    %v210 = vpop.f32.mrf.mxu0
    %v211 = vadd.f32 %v156, %v210
    %212 = vmatmul.f32.gmra.mxu0 %v102
    %v213 = vpop.f32.mrf.mxu0
    %v214 = vadd.f32 %v156, %v213
    %215 = vmatmul.f32.gmra.mxu0 %v103
    %v216 = vpop.f32.mrf.mxu0
    %v217 = vadd.f32 %v156, %v216
    %218 = vmatmul.f32.gmra.mxu0 %v104
    %v219 = vpop.f32.mrf.mxu0
    %v220 = vadd.f32 %v156, %v219
    %221 = vmatmul.f32.gmra.mxu0 %v105
    %v222 = vpop.f32.mrf.mxu0
    %v223 = vadd.f32 %v156, %v222
    %224 = vmatmul.f32.gmra.mxu0 %v106
    %v225 = vpop.f32.mrf.mxu0
    %v226 = vadd.f32 %v156, %v225
    %227 = vmatmul.f32.gmra.mxu0 %v107
    %v228 = vpop.f32.mrf.mxu0
    %v229 = vadd.f32 %v156, %v228
    %230 = vmatmul.f32.gmra.mxu0 %v108
    %v231 = vpop.f32.mrf.mxu0
    %v232 = vadd.f32 %v156, %v231
    %233 = vmatmul.f32.gmra.mxu0 %v109
    %v234 = vpop.f32.mrf.mxu0
    %v235 = vadd.f32 %v156, %v234
    %236 = vmatmul.f32.gmra.mxu0 %v110
    %v237 = vpop.f32.mrf.mxu0
    %v238 = vadd.f32 %v156, %v237
    %239 = vmatmul.f32.gmra.mxu0 %v111
    %v240 = vpop.f32.mrf.mxu0
    %v241 = vadd.f32 %v156, %v240
    %242 = vmatmul.f32.gmra.mxu0 %v112
    %v243 = vpop.f32.mrf.mxu0
    %v244 = vadd.f32 %v156, %v243
    %245 = vmatmul.f32.gmra.mxu0 %v113
    %v246 = vpop.f32.mrf.mxu0
    %v247 = vadd.f32 %v156, %v246
    %248 = vmatmul.f32.gmra.mxu0 %v114
    %v249 = vpop.f32.mrf.mxu0
    %v250 = vadd.f32 %v156, %v249
    %251 = vmatmul.f32.gmra.mxu0 %v115
    %v252 = vpop.f32.mrf.mxu0
    %v253 = vadd.f32 %v156, %v252
    %254 = vmatmul.f32.gmra.mxu0 %v116
    %v255 = vpop.f32.mrf.mxu0
    %v256 = vadd.f32 %v156, %v255
    %257 = vmatmul.f32.gmra.mxu0 %v117
    %v258 = vpop.f32.mrf.mxu0
    %v259 = vadd.f32 %v156, %v258
    %260 = vmatmul.f32.gmra.mxu0 %v118
    %v261 = vpop.f32.mrf.mxu0
    %v262 = vadd.f32 %v156, %v261
    %263 = vmatmul.f32.gmra.mxu0 %v119
    %v264 = vpop.f32.mrf.mxu0
    %v265 = vadd.f32 %v156, %v264
    %266 = vmatmul.f32.gmra.mxu0 %v120
    %v267 = vpop.f32.mrf.mxu0
    %v268 = vadd.f32 %v156, %v267
    %269 = vmatmul.f32.gmra.mxu0 %v121
    %v270 = vpop.f32.mrf.mxu0
    %v271 = vadd.f32 %v156, %v270
    %272 = vdwg.mxu0
    %273 = vmatpush.msra.mxu0 %v153
    %274 = vmatpush.msra.mxu0 %v151
    %275 = vmatpush.msra.mxu0 %v149
    %276 = vmatpush.msra.mxu0 %v147
    %277 = vmatpush.msra.mxu0 %v145
    %278 = vmatpush.msra.mxu0 %v143
    %279 = vmatpush.msra.mxu0 %v141
    %280 = vmatpush.msra.mxu0 %v139
    %281 = vmatpush.msra.mxu0 %v137
    %282 = vmatpush.msra.mxu0 %v135
    %283 = vmatpush.msra.mxu0 %v133
    %284 = vmatpush.msra.mxu0 %v131
    %285 = vmatpush.msra.mxu0 %v129
    %286 = vmatpush.msra.mxu0 %v127
    %287 = vmatpush.msra.mxu0 %v125
    %288 = vmatpush.msra.mxu0 %v123
    %289 = vmatmul.f32.gmra.mxu0 %v90
    %v290 = vpop.f32.mrf.mxu0
    %v291 = vadd.f32 %v157, %v290
    %292 = vmatmul.f32.gmra.mxu0 %v91
    %v293 = vpop.f32.mrf.mxu0
    %v294 = vadd.f32 %v157, %v293
    %295 = vmatmul.f32.gmra.mxu0 %v92
    %v296 = vpop.f32.mrf.mxu0
    %v297 = vadd.f32 %v157, %v296
    %298 = vmatmul.f32.gmra.mxu0 %v93
    %v299 = vpop.f32.mrf.mxu0
    %v300 = vadd.f32 %v157, %v299
    %301 = vmatmul.f32.gmra.mxu0 %v94
    %v302 = vpop.f32.mrf.mxu0
    %v303 = vadd.f32 %v157, %v302
    %304 = vmatmul.f32.gmra.mxu0 %v95
    %v305 = vpop.f32.mrf.mxu0
    %v306 = vadd.f32 %v157, %v305
    %307 = vmatmul.f32.gmra.mxu0 %v96
    %v308 = vpop.f32.mrf.mxu0
    %v309 = vadd.f32 %v157, %v308
    %310 = vmatmul.f32.gmra.mxu0 %v97
    %v311 = vpop.f32.mrf.mxu0
    %v312 = vadd.f32 %v157, %v311
    %313 = vmatmul.f32.gmra.mxu0 %v98
    %v314 = vpop.f32.mrf.mxu0
    %v315 = vadd.f32 %v157, %v314
    %316 = vmatmul.f32.gmra.mxu0 %v99
    %v317 = vpop.f32.mrf.mxu0
    %v318 = vadd.f32 %v157, %v317
    %319 = vmatmul.f32.gmra.mxu0 %v100
    %v320 = vpop.f32.mrf.mxu0
    %v321 = vadd.f32 %v157, %v320
    %322 = vmatmul.f32.gmra.mxu0 %v101
    %v323 = vpop.f32.mrf.mxu0
    %v324 = vadd.f32 %v157, %v323
    %325 = vmatmul.f32.gmra.mxu0 %v102
    %v326 = vpop.f32.mrf.mxu0
    %v327 = vadd.f32 %v157, %v326
    %328 = vmatmul.f32.gmra.mxu0 %v103
    %v329 = vpop.f32.mrf.mxu0
    %v330 = vadd.f32 %v157, %v329
    %331 = vmatmul.f32.gmra.mxu0 %v104
    %v332 = vpop.f32.mrf.mxu0
    %v333 = vadd.f32 %v157, %v332
    %334 = vmatmul.f32.gmra.mxu0 %v105
    %v335 = vpop.f32.mrf.mxu0
    %v336 = vadd.f32 %v157, %v335
    %337 = vmatmul.f32.gmra.mxu0 %v106
    %v338 = vpop.f32.mrf.mxu0
    %v339 = vadd.f32 %v157, %v338
    %340 = vmatmul.f32.gmra.mxu0 %v107
    %v341 = vpop.f32.mrf.mxu0
    %v342 = vadd.f32 %v157, %v341
    %343 = vmatmul.f32.gmra.mxu0 %v108
    %v344 = vpop.f32.mrf.mxu0
    %v345 = vadd.f32 %v157, %v344
    %346 = vmatmul.f32.gmra.mxu0 %v109
    %v347 = vpop.f32.mrf.mxu0
    %v348 = vadd.f32 %v157, %v347
    %349 = vmatmul.f32.gmra.mxu0 %v110
    %v350 = vpop.f32.mrf.mxu0
    %v351 = vadd.f32 %v157, %v350
    %352 = vmatmul.f32.gmra.mxu0 %v111
    %v353 = vpop.f32.mrf.mxu0
    %v354 = vadd.f32 %v157, %v353
    %355 = vmatmul.f32.gmra.mxu0 %v112
    %v356 = vpop.f32.mrf.mxu0
    %v357 = vadd.f32 %v157, %v356
    %358 = vmatmul.f32.gmra.mxu0 %v113
    %v359 = vpop.f32.mrf.mxu0
    %v360 = vadd.f32 %v157, %v359
    %361 = vmatmul.f32.gmra.mxu0 %v114
    %v362 = vpop.f32.mrf.mxu0
    %v363 = vadd.f32 %v157, %v362
    %364 = vmatmul.f32.gmra.mxu0 %v115
    %v365 = vpop.f32.mrf.mxu0
    %v366 = vadd.f32 %v157, %v365
    %367 = vmatmul.f32.gmra.mxu0 %v116
    %v368 = vpop.f32.mrf.mxu0
    %v369 = vadd.f32 %v157, %v368
    %370 = vmatmul.f32.gmra.mxu0 %v117
    %v371 = vpop.f32.mrf.mxu0
    %v372 = vadd.f32 %v157, %v371
    %373 = vmatmul.f32.gmra.mxu0 %v118
    %v374 = vpop.f32.mrf.mxu0
    %v375 = vadd.f32 %v157, %v374
    %376 = vmatmul.f32.gmra.mxu0 %v119
    %v377 = vpop.f32.mrf.mxu0
    %v378 = vadd.f32 %v157, %v377
    %379 = vmatmul.f32.gmra.mxu0 %v120
    %v380 = vpop.f32.mrf.mxu0
    %v381 = vadd.f32 %v157, %v380
    %382 = vmatmul.f32.gmra.mxu0 %v121
    %v383 = vpop.f32.mrf.mxu0
    %v384 = vadd.f32 %v157, %v383
    %385 = vdwg.mxu0
    %v386 = vtanh.pop %v178
    %v387 = vtanh.pop %v181
    %v388 = vtanh.pop %v184
    %v389 = vtanh.pop %v187
    %v390 = vtanh.pop %v190
    %v391 = vtanh.pop %v193
    %v392 = vtanh.pop %v196
    %v393 = vtanh.pop %v199
    %v394 = vtanh.pop %v202
    %v395 = vtanh.pop %v205
    %v396 = vtanh.pop %v208
    %v397 = vtanh.pop %v211
    %v398 = vtanh.pop %v214
    %v399 = vtanh.pop %v217
    %v400 = vtanh.pop %v220
    %v401 = vtanh.pop %v223
    %v402 = vtanh.pop %v226
    %v403 = vtanh.pop %v229
    %v404 = vtanh.pop %v232
    %v405 = vtanh.pop %v235
    %v406 = vtanh.pop %v238
    %v407 = vtanh.pop %v241
    %v408 = vtanh.pop %v244
    %v409 = vtanh.pop %v247
    %v410 = vtanh.pop %v250
    %v411 = vtanh.pop %v253
    %v412 = vtanh.pop %v256
    %v413 = vtanh.pop %v259
    %v414 = vtanh.pop %v262
    %v415 = vtanh.pop %v265
    %v416 = vtanh.pop %v268
    %v417 = vtanh.pop %v271
    %v418 = vxor.u32 %v291, 2147483648
    %v419 = vxor.u32 %v294, 2147483648
    %v420 = vxor.u32 %v297, 2147483648
    %v421 = vxor.u32 %v300, 2147483648
    %v422 = vxor.u32 %v303, 2147483648
    %v423 = vxor.u32 %v306, 2147483648
    %v424 = vxor.u32 %v309, 2147483648
    %v425 = vxor.u32 %v312, 2147483648
    %v426 = vxor.u32 %v315, 2147483648
    %v427 = vxor.u32 %v318, 2147483648
    %v428 = vxor.u32 %v321, 2147483648
    %v429 = vxor.u32 %v324, 2147483648
    %v430 = vxor.u32 %v327, 2147483648
    %v431 = vxor.u32 %v330, 2147483648
    %v432 = vxor.u32 %v333, 2147483648
    %v433 = vxor.u32 %v336, 2147483648
    %v434 = vxor.u32 %v339, 2147483648
    %v435 = vxor.u32 %v342, 2147483648
    %v436 = vxor.u32 %v345, 2147483648
    %v437 = vxor.u32 %v348, 2147483648
    %v438 = vxor.u32 %v351, 2147483648
    %v439 = vxor.u32 %v354, 2147483648
    %v440 = vxor.u32 %v357, 2147483648
    %v441 = vxor.u32 %v360, 2147483648
    %v442 = vxor.u32 %v363, 2147483648
    %v443 = vxor.u32 %v366, 2147483648
    %v444 = vxor.u32 %v369, 2147483648
    %v445 = vxor.u32 %v372, 2147483648
    %v446 = vxor.u32 %v375, 2147483648
    %v447 = vxor.u32 %v378, 2147483648
    %v448 = vxor.u32 %v381, 2147483648
    %v449 = vxor.u32 %v384, 2147483648
    %v450 = vmul.f32 %v418, 1.442695
    %v451 = vpow.pop %v450
    %v452 = vmul.f32 %v419, 1.442695
    %v453 = vpow.pop %v452
    %v454 = vmul.f32 %v420, 1.442695
    %v455 = vpow.pop %v454
    %v456 = vmul.f32 %v421, 1.442695
    %v457 = vpow.pop %v456
    %v458 = vmul.f32 %v422, 1.442695
    %v459 = vpow.pop %v458
    %v460 = vmul.f32 %v423, 1.442695
    %v461 = vpow.pop %v460
    %v462 = vmul.f32 %v424, 1.442695
    %v463 = vpow.pop %v462
    %v464 = vmul.f32 %v425, 1.442695
    %v465 = vpow.pop %v464
    %v466 = vmul.f32 %v426, 1.442695
    %v467 = vpow.pop %v466
    %v468 = vmul.f32 %v427, 1.442695
    %v469 = vpow.pop %v468
    %v470 = vmul.f32 %v428, 1.442695
    %v471 = vpow.pop %v470
    %v472 = vmul.f32 %v429, 1.442695
    %v473 = vpow.pop %v472
    %v474 = vmul.f32 %v430, 1.442695
    %v475 = vpow.pop %v474
    %v476 = vmul.f32 %v431, 1.442695
    %v477 = vpow.pop %v476
    %v478 = vmul.f32 %v432, 1.442695
    %v479 = vpow.pop %v478
    %v480 = vmul.f32 %v433, 1.442695
    %v481 = vpow.pop %v480
    %v482 = vmul.f32 %v434, 1.442695
    %v483 = vpow.pop %v482
    %v484 = vmul.f32 %v435, 1.442695
    %v485 = vpow.pop %v484
    %v486 = vmul.f32 %v436, 1.442695
    %v487 = vpow.pop %v486
    %v488 = vmul.f32 %v437, 1.442695
    %v489 = vpow.pop %v488
    %v490 = vmul.f32 %v438, 1.442695
    %v491 = vpow.pop %v490
    %v492 = vmul.f32 %v439, 1.442695
    %v493 = vpow.pop %v492
    %v494 = vmul.f32 %v440, 1.442695
    %v495 = vpow.pop %v494
    %v496 = vmul.f32 %v441, 1.442695
    %v497 = vpow.pop %v496
    %v498 = vmul.f32 %v442, 1.442695
    %v499 = vpow.pop %v498
    %v500 = vmul.f32 %v443, 1.442695
    %v501 = vpow.pop %v500
    %v502 = vmul.f32 %v444, 1.442695
    %v503 = vpow.pop %v502
    %v504 = vmul.f32 %v445, 1.442695
    %v505 = vpow.pop %v504
    %v506 = vmul.f32 %v446, 1.442695
    %v507 = vpow.pop %v506
    %v508 = vmul.f32 %v447, 1.442695
    %v509 = vpow.pop %v508
    %v510 = vmul.f32 %v448, 1.442695
    %v511 = vpow.pop %v510
    %v512 = vmul.f32 %v449, 1.442695
    %v513 = vpow.pop %v512
    %v514 = vadd.f32 %v451, 1.0
    %v515 = vadd.f32 %v453, 1.0
    %v516 = vadd.f32 %v455, 1.0
    %v517 = vadd.f32 %v457, 1.0
    %v518 = vadd.f32 %v459, 1.0
    %v519 = vadd.f32 %v461, 1.0
    %v520 = vadd.f32 %v463, 1.0
    %v521 = vadd.f32 %v465, 1.0
    %v522 = vadd.f32 %v467, 1.0
    %v523 = vadd.f32 %v469, 1.0
    %v524 = vadd.f32 %v471, 1.0
    %v525 = vadd.f32 %v473, 1.0
    %v526 = vadd.f32 %v475, 1.0
    %v527 = vadd.f32 %v477, 1.0
    %v528 = vadd.f32 %v479, 1.0
    %v529 = vadd.f32 %v481, 1.0
    %v530 = vadd.f32 %v483, 1.0
    %v531 = vadd.f32 %v485, 1.0
    %v532 = vadd.f32 %v487, 1.0
    %v533 = vadd.f32 %v489, 1.0
    %v534 = vadd.f32 %v491, 1.0
    %v535 = vadd.f32 %v493, 1.0
    %v536 = vadd.f32 %v495, 1.0
    %v537 = vadd.f32 %v497, 1.0
    %v538 = vadd.f32 %v499, 1.0
    %v539 = vadd.f32 %v501, 1.0
    %v540 = vadd.f32 %v503, 1.0
    %v541 = vadd.f32 %v505, 1.0
    %v542 = vadd.f32 %v507, 1.0
    %v543 = vadd.f32 %v509, 1.0
    %v544 = vadd.f32 %v511, 1.0
    %v545 = vadd.f32 %v513, 1.0
    %v546 = vrcp.pop %v514
    %v547 = vmul.f32 %v514, %v546
    %v548 = vsub.f32 1.0, %v547
    %v549 = vmul.f32 %v546, %v548
    %v550 = vadd.f32 %v546, %v549
    %vm551 = vweird.f32 %v514
    %vm552 = vweird.f32 %v546
    %vm553 = vmor %vm551, %vm552
    %v554 = vsel %vm553, %v546, %v550
    %v555 = vand.u32 2147483647, %v514
    %vm556 = vcmp.eq.f32.partialorder %v555, 8.507059e+37
    %v557 = vand.u32 %v514, 2147483648
    %v558 = vor.u32 1.1754944e-38, %v557
    %v559 = vsel %vm556, %v558, %v554
    %v560 = vmul.f32 1.0, %v559
    %v561 = vrcp.pop %v515
    %v562 = vmul.f32 %v515, %v561
    %v563 = vsub.f32 1.0, %v562
    %v564 = vmul.f32 %v561, %v563
    %v565 = vadd.f32 %v561, %v564
    %vm566 = vweird.f32 %v515
    %vm567 = vweird.f32 %v561
    %vm568 = vmor %vm566, %vm567
    %v569 = vsel %vm568, %v561, %v565
    %v570 = vand.u32 2147483647, %v515
    %vm571 = vcmp.eq.f32.partialorder %v570, 8.507059e+37
    %v572 = vand.u32 %v515, 2147483648
    %v573 = vor.u32 1.1754944e-38, %v572
    %v574 = vsel %vm571, %v573, %v569
    %v575 = vmul.f32 1.0, %v574
    %v576 = vrcp.pop %v516
    %v577 = vmul.f32 %v516, %v576
    %v578 = vsub.f32 1.0, %v577
    %v579 = vmul.f32 %v576, %v578
    %v580 = vadd.f32 %v576, %v579
    %vm581 = vweird.f32 %v516
    %vm582 = vweird.f32 %v576
    %vm583 = vmor %vm581, %vm582
    %v584 = vsel %vm583, %v576, %v580
    %v585 = vand.u32 2147483647, %v516
    %vm586 = vcmp.eq.f32.partialorder %v585, 8.507059e+37
    %v587 = vand.u32 %v516, 2147483648
    %v588 = vor.u32 1.1754944e-38, %v587
    %v589 = vsel %vm586, %v588, %v584
    %v590 = vmul.f32 1.0, %v589
    %v591 = vrcp.pop %v517
    %v592 = vmul.f32 %v517, %v591
    %v593 = vsub.f32 1.0, %v592
    %v594 = vmul.f32 %v591, %v593
    %v595 = vadd.f32 %v591, %v594
    %vm596 = vweird.f32 %v517
    %vm597 = vweird.f32 %v591
    %vm598 = vmor %vm596, %vm597
    %v599 = vsel %vm598, %v591, %v595
    %v600 = vand.u32 2147483647, %v517
    %vm601 = vcmp.eq.f32.partialorder %v600, 8.507059e+37
    %v602 = vand.u32 %v517, 2147483648
    %v603 = vor.u32 1.1754944e-38, %v602
    %v604 = vsel %vm601, %v603, %v599
    %v605 = vmul.f32 1.0, %v604
    %v606 = vrcp.pop %v518
    %v607 = vmul.f32 %v518, %v606
    %v608 = vsub.f32 1.0, %v607
    %v609 = vmul.f32 %v606, %v608
    %v610 = vadd.f32 %v606, %v609
    %vm611 = vweird.f32 %v518
    %vm612 = vweird.f32 %v606
    %vm613 = vmor %vm611, %vm612
    %v614 = vsel %vm613, %v606, %v610
    %v615 = vand.u32 2147483647, %v518
    %vm616 = vcmp.eq.f32.partialorder %v615, 8.507059e+37
    %v617 = vand.u32 %v518, 2147483648
    %v618 = vor.u32 1.1754944e-38, %v617
    %v619 = vsel %vm616, %v618, %v614
    %v620 = vmul.f32 1.0, %v619
    %v621 = vrcp.pop %v519
    %v622 = vmul.f32 %v519, %v621
    %v623 = vsub.f32 1.0, %v622
    %v624 = vmul.f32 %v621, %v623
    %v625 = vadd.f32 %v621, %v624
    %vm626 = vweird.f32 %v519
    %vm627 = vweird.f32 %v621
    %vm628 = vmor %vm626, %vm627
    %v629 = vsel %vm628, %v621, %v625
    %v630 = vand.u32 2147483647, %v519
    %vm631 = vcmp.eq.f32.partialorder %v630, 8.507059e+37
    %v632 = vand.u32 %v519, 2147483648
    %v633 = vor.u32 1.1754944e-38, %v632
    %v634 = vsel %vm631, %v633, %v629
    %v635 = vmul.f32 1.0, %v634
    %v636 = vrcp.pop %v520
    %v637 = vmul.f32 %v520, %v636
    %v638 = vsub.f32 1.0, %v637
    %v639 = vmul.f32 %v636, %v638
    %v640 = vadd.f32 %v636, %v639
    %vm641 = vweird.f32 %v520
    %vm642 = vweird.f32 %v636
    %vm643 = vmor %vm641, %vm642
    %v644 = vsel %vm643, %v636, %v640
    %v645 = vand.u32 2147483647, %v520
    %vm646 = vcmp.eq.f32.partialorder %v645, 8.507059e+37
    %v647 = vand.u32 %v520, 2147483648
    %v648 = vor.u32 1.1754944e-38, %v647
    %v649 = vsel %vm646, %v648, %v644
    %v650 = vmul.f32 1.0, %v649
    %v651 = vrcp.pop %v521
    %v652 = vmul.f32 %v521, %v651
    %v653 = vsub.f32 1.0, %v652
    %v654 = vmul.f32 %v651, %v653
    %v655 = vadd.f32 %v651, %v654
    %vm656 = vweird.f32 %v521
    %vm657 = vweird.f32 %v651
    %vm658 = vmor %vm656, %vm657
    %v659 = vsel %vm658, %v651, %v655
    %v660 = vand.u32 2147483647, %v521
    %vm661 = vcmp.eq.f32.partialorder %v660, 8.507059e+37
    %v662 = vand.u32 %v521, 2147483648
    %v663 = vor.u32 1.1754944e-38, %v662
    %v664 = vsel %vm661, %v663, %v659
    %v665 = vmul.f32 1.0, %v664
    %v666 = vrcp.pop %v522
    %v667 = vmul.f32 %v522, %v666
    %v668 = vsub.f32 1.0, %v667
    %v669 = vmul.f32 %v666, %v668
    %v670 = vadd.f32 %v666, %v669
    %vm671 = vweird.f32 %v522
    %vm672 = vweird.f32 %v666
    %vm673 = vmor %vm671, %vm672
    %v674 = vsel %vm673, %v666, %v670
    %v675 = vand.u32 2147483647, %v522
    %vm676 = vcmp.eq.f32.partialorder %v675, 8.507059e+37
    %v677 = vand.u32 %v522, 2147483648
    %v678 = vor.u32 1.1754944e-38, %v677
    %v679 = vsel %vm676, %v678, %v674
    %v680 = vmul.f32 1.0, %v679
    %v681 = vrcp.pop %v523
    %v682 = vmul.f32 %v523, %v681
    %v683 = vsub.f32 1.0, %v682
    %v684 = vmul.f32 %v681, %v683
    %v685 = vadd.f32 %v681, %v684
    %vm686 = vweird.f32 %v523
    %vm687 = vweird.f32 %v681
    %vm688 = vmor %vm686, %vm687
    %v689 = vsel %vm688, %v681, %v685
    %v690 = vand.u32 2147483647, %v523
    %vm691 = vcmp.eq.f32.partialorder %v690, 8.507059e+37
    %v692 = vand.u32 %v523, 2147483648
    %v693 = vor.u32 1.1754944e-38, %v692
    %v694 = vsel %vm691, %v693, %v689
    %v695 = vmul.f32 1.0, %v694
    %v696 = vrcp.pop %v524
    %v697 = vmul.f32 %v524, %v696
    %v698 = vsub.f32 1.0, %v697
    %v699 = vmul.f32 %v696, %v698
    %v700 = vadd.f32 %v696, %v699
    %vm701 = vweird.f32 %v524
    %vm702 = vweird.f32 %v696
    %vm703 = vmor %vm701, %vm702
    %v704 = vsel %vm703, %v696, %v700
    %v705 = vand.u32 2147483647, %v524
    %vm706 = vcmp.eq.f32.partialorder %v705, 8.507059e+37
    %v707 = vand.u32 %v524, 2147483648
    %v708 = vor.u32 1.1754944e-38, %v707
    %v709 = vsel %vm706, %v708, %v704
    %v710 = vmul.f32 1.0, %v709
    %v711 = vrcp.pop %v525
    %v712 = vmul.f32 %v525, %v711
    %v713 = vsub.f32 1.0, %v712
    %v714 = vmul.f32 %v711, %v713
    %v715 = vadd.f32 %v711, %v714
    %vm716 = vweird.f32 %v525
    %vm717 = vweird.f32 %v711
    %vm718 = vmor %vm716, %vm717
    %v719 = vsel %vm718, %v711, %v715
    %v720 = vand.u32 2147483647, %v525
    %vm721 = vcmp.eq.f32.partialorder %v720, 8.507059e+37
    %v722 = vand.u32 %v525, 2147483648
    %v723 = vor.u32 1.1754944e-38, %v722
    %v724 = vsel %vm721, %v723, %v719
    %v725 = vmul.f32 1.0, %v724
    %v726 = vrcp.pop %v526
    %v727 = vmul.f32 %v526, %v726
    %v728 = vsub.f32 1.0, %v727
    %v729 = vmul.f32 %v726, %v728
    %v730 = vadd.f32 %v726, %v729
    %vm731 = vweird.f32 %v526
    %vm732 = vweird.f32 %v726
    %vm733 = vmor %vm731, %vm732
    %v734 = vsel %vm733, %v726, %v730
    %v735 = vand.u32 2147483647, %v526
    %vm736 = vcmp.eq.f32.partialorder %v735, 8.507059e+37
    %v737 = vand.u32 %v526, 2147483648
    %v738 = vor.u32 1.1754944e-38, %v737
    %v739 = vsel %vm736, %v738, %v734
    %v740 = vmul.f32 1.0, %v739
    %v741 = vrcp.pop %v527
    %v742 = vmul.f32 %v527, %v741
    %v743 = vsub.f32 1.0, %v742
    %v744 = vmul.f32 %v741, %v743
    %v745 = vadd.f32 %v741, %v744
    %vm746 = vweird.f32 %v527
    %vm747 = vweird.f32 %v741
    %vm748 = vmor %vm746, %vm747
    %v749 = vsel %vm748, %v741, %v745
    %v750 = vand.u32 2147483647, %v527
    %vm751 = vcmp.eq.f32.partialorder %v750, 8.507059e+37
    %v752 = vand.u32 %v527, 2147483648
    %v753 = vor.u32 1.1754944e-38, %v752
    %v754 = vsel %vm751, %v753, %v749
    %v755 = vmul.f32 1.0, %v754
    %v756 = vrcp.pop %v528
    %v757 = vmul.f32 %v528, %v756
    %v758 = vsub.f32 1.0, %v757
    %v759 = vmul.f32 %v756, %v758
    %v760 = vadd.f32 %v756, %v759
    %vm761 = vweird.f32 %v528
    %vm762 = vweird.f32 %v756
    %vm763 = vmor %vm761, %vm762
    %v764 = vsel %vm763, %v756, %v760
    %v765 = vand.u32 2147483647, %v528
    %vm766 = vcmp.eq.f32.partialorder %v765, 8.507059e+37
    %v767 = vand.u32 %v528, 2147483648
    %v768 = vor.u32 1.1754944e-38, %v767
    %v769 = vsel %vm766, %v768, %v764
    %v770 = vmul.f32 1.0, %v769
    %v771 = vrcp.pop %v529
    %v772 = vmul.f32 %v529, %v771
    %v773 = vsub.f32 1.0, %v772
    %v774 = vmul.f32 %v771, %v773
    %v775 = vadd.f32 %v771, %v774
    %vm776 = vweird.f32 %v529
    %vm777 = vweird.f32 %v771
    %vm778 = vmor %vm776, %vm777
    %v779 = vsel %vm778, %v771, %v775
    %v780 = vand.u32 2147483647, %v529
    %vm781 = vcmp.eq.f32.partialorder %v780, 8.507059e+37
    %v782 = vand.u32 %v529, 2147483648
    %v783 = vor.u32 1.1754944e-38, %v782
    %v784 = vsel %vm781, %v783, %v779
    %v785 = vmul.f32 1.0, %v784
    %v786 = vrcp.pop %v530
    %v787 = vmul.f32 %v530, %v786
    %v788 = vsub.f32 1.0, %v787
    %v789 = vmul.f32 %v786, %v788
    %v790 = vadd.f32 %v786, %v789
    %vm791 = vweird.f32 %v530
    %vm792 = vweird.f32 %v786
    %vm793 = vmor %vm791, %vm792
    %v794 = vsel %vm793, %v786, %v790
    %v795 = vand.u32 2147483647, %v530
    %vm796 = vcmp.eq.f32.partialorder %v795, 8.507059e+37
    %v797 = vand.u32 %v530, 2147483648
    %v798 = vor.u32 1.1754944e-38, %v797
    %v799 = vsel %vm796, %v798, %v794
    %v800 = vmul.f32 1.0, %v799
    %v801 = vrcp.pop %v531
    %v802 = vmul.f32 %v531, %v801
    %v803 = vsub.f32 1.0, %v802
    %v804 = vmul.f32 %v801, %v803
    %v805 = vadd.f32 %v801, %v804
    %vm806 = vweird.f32 %v531
    %vm807 = vweird.f32 %v801
    %vm808 = vmor %vm806, %vm807
    %v809 = vsel %vm808, %v801, %v805
    %v810 = vand.u32 2147483647, %v531
    %vm811 = vcmp.eq.f32.partialorder %v810, 8.507059e+37
    %v812 = vand.u32 %v531, 2147483648
    %v813 = vor.u32 1.1754944e-38, %v812
    %v814 = vsel %vm811, %v813, %v809
    %v815 = vmul.f32 1.0, %v814
    %v816 = vrcp.pop %v532
    %v817 = vmul.f32 %v532, %v816
    %v818 = vsub.f32 1.0, %v817
    %v819 = vmul.f32 %v816, %v818
    %v820 = vadd.f32 %v816, %v819
    %vm821 = vweird.f32 %v532
    %vm822 = vweird.f32 %v816
    %vm823 = vmor %vm821, %vm822
    %v824 = vsel %vm823, %v816, %v820
    %v825 = vand.u32 2147483647, %v532
    %vm826 = vcmp.eq.f32.partialorder %v825, 8.507059e+37
    %v827 = vand.u32 %v532, 2147483648
    %v828 = vor.u32 1.1754944e-38, %v827
    %v829 = vsel %vm826, %v828, %v824
    %v830 = vmul.f32 1.0, %v829
    %v831 = vrcp.pop %v533
    %v832 = vmul.f32 %v533, %v831
    %v833 = vsub.f32 1.0, %v832
    %v834 = vmul.f32 %v831, %v833
    %v835 = vadd.f32 %v831, %v834
    %vm836 = vweird.f32 %v533
    %vm837 = vweird.f32 %v831
    %vm838 = vmor %vm836, %vm837
    %v839 = vsel %vm838, %v831, %v835
    %v840 = vand.u32 2147483647, %v533
    %vm841 = vcmp.eq.f32.partialorder %v840, 8.507059e+37
    %v842 = vand.u32 %v533, 2147483648
    %v843 = vor.u32 1.1754944e-38, %v842
    %v844 = vsel %vm841, %v843, %v839
    %v845 = vmul.f32 1.0, %v844
    %v846 = vrcp.pop %v534
    %v847 = vmul.f32 %v534, %v846
    %v848 = vsub.f32 1.0, %v847
    %v849 = vmul.f32 %v846, %v848
    %v850 = vadd.f32 %v846, %v849
    %vm851 = vweird.f32 %v534
    %vm852 = vweird.f32 %v846
    %vm853 = vmor %vm851, %vm852
    %v854 = vsel %vm853, %v846, %v850
    %v855 = vand.u32 2147483647, %v534
    %vm856 = vcmp.eq.f32.partialorder %v855, 8.507059e+37
    %v857 = vand.u32 %v534, 2147483648
    %v858 = vor.u32 1.1754944e-38, %v857
    %v859 = vsel %vm856, %v858, %v854
    %v860 = vmul.f32 1.0, %v859
    %v861 = vrcp.pop %v535
    %v862 = vmul.f32 %v535, %v861
    %v863 = vsub.f32 1.0, %v862
    %v864 = vmul.f32 %v861, %v863
    %v865 = vadd.f32 %v861, %v864
    %vm866 = vweird.f32 %v535
    %vm867 = vweird.f32 %v861
    %vm868 = vmor %vm866, %vm867
    %v869 = vsel %vm868, %v861, %v865
    %v870 = vand.u32 2147483647, %v535
    %vm871 = vcmp.eq.f32.partialorder %v870, 8.507059e+37
    %v872 = vand.u32 %v535, 2147483648
    %v873 = vor.u32 1.1754944e-38, %v872
    %v874 = vsel %vm871, %v873, %v869
    %v875 = vmul.f32 1.0, %v874
    %v876 = vrcp.pop %v536
    %v877 = vmul.f32 %v536, %v876
    %v878 = vsub.f32 1.0, %v877
    %v879 = vmul.f32 %v876, %v878
    %v880 = vadd.f32 %v876, %v879
    %vm881 = vweird.f32 %v536
    %vm882 = vweird.f32 %v876
    %vm883 = vmor %vm881, %vm882
    %v884 = vsel %vm883, %v876, %v880
    %v885 = vand.u32 2147483647, %v536
    %vm886 = vcmp.eq.f32.partialorder %v885, 8.507059e+37
    %v887 = vand.u32 %v536, 2147483648
    %v888 = vor.u32 1.1754944e-38, %v887
    %v889 = vsel %vm886, %v888, %v884
    %v890 = vmul.f32 1.0, %v889
    %v891 = vrcp.pop %v537
    %v892 = vmul.f32 %v537, %v891
    %v893 = vsub.f32 1.0, %v892
    %v894 = vmul.f32 %v891, %v893
    %v895 = vadd.f32 %v891, %v894
    %vm896 = vweird.f32 %v537
    %vm897 = vweird.f32 %v891
    %vm898 = vmor %vm896, %vm897
    %v899 = vsel %vm898, %v891, %v895
    %v900 = vand.u32 2147483647, %v537
    %vm901 = vcmp.eq.f32.partialorder %v900, 8.507059e+37
    %v902 = vand.u32 %v537, 2147483648
    %v903 = vor.u32 1.1754944e-38, %v902
    %v904 = vsel %vm901, %v903, %v899
    %v905 = vmul.f32 1.0, %v904
    %v906 = vrcp.pop %v538
    %v907 = vmul.f32 %v538, %v906
    %v908 = vsub.f32 1.0, %v907
    %v909 = vmul.f32 %v906, %v908
    %v910 = vadd.f32 %v906, %v909
    %vm911 = vweird.f32 %v538
    %vm912 = vweird.f32 %v906
    %vm913 = vmor %vm911, %vm912
    %v914 = vsel %vm913, %v906, %v910
    %v915 = vand.u32 2147483647, %v538
    %vm916 = vcmp.eq.f32.partialorder %v915, 8.507059e+37
    %v917 = vand.u32 %v538, 2147483648
    %v918 = vor.u32 1.1754944e-38, %v917
    %v919 = vsel %vm916, %v918, %v914
    %v920 = vmul.f32 1.0, %v919
    %v921 = vrcp.pop %v539
    %v922 = vmul.f32 %v539, %v921
    %v923 = vsub.f32 1.0, %v922
    %v924 = vmul.f32 %v921, %v923
    %v925 = vadd.f32 %v921, %v924
    %vm926 = vweird.f32 %v539
    %vm927 = vweird.f32 %v921
    %vm928 = vmor %vm926, %vm927
    %v929 = vsel %vm928, %v921, %v925
    %v930 = vand.u32 2147483647, %v539
    %vm931 = vcmp.eq.f32.partialorder %v930, 8.507059e+37
    %v932 = vand.u32 %v539, 2147483648
    %v933 = vor.u32 1.1754944e-38, %v932
    %v934 = vsel %vm931, %v933, %v929
    %v935 = vmul.f32 1.0, %v934
    %v936 = vrcp.pop %v540
    %v937 = vmul.f32 %v540, %v936
    %v938 = vsub.f32 1.0, %v937
    %v939 = vmul.f32 %v936, %v938
    %v940 = vadd.f32 %v936, %v939
    %vm941 = vweird.f32 %v540
    %vm942 = vweird.f32 %v936
    %vm943 = vmor %vm941, %vm942
    %v944 = vsel %vm943, %v936, %v940
    %v945 = vand.u32 2147483647, %v540
    %vm946 = vcmp.eq.f32.partialorder %v945, 8.507059e+37
    %v947 = vand.u32 %v540, 2147483648
    %v948 = vor.u32 1.1754944e-38, %v947
    %v949 = vsel %vm946, %v948, %v944
    %v950 = vmul.f32 1.0, %v949
    %v951 = vrcp.pop %v541
    %v952 = vmul.f32 %v541, %v951
    %v953 = vsub.f32 1.0, %v952
    %v954 = vmul.f32 %v951, %v953
    %v955 = vadd.f32 %v951, %v954
    %vm956 = vweird.f32 %v541
    %vm957 = vweird.f32 %v951
    %vm958 = vmor %vm956, %vm957
    %v959 = vsel %vm958, %v951, %v955
    %v960 = vand.u32 2147483647, %v541
    %vm961 = vcmp.eq.f32.partialorder %v960, 8.507059e+37
    %v962 = vand.u32 %v541, 2147483648
    %v963 = vor.u32 1.1754944e-38, %v962
    %v964 = vsel %vm961, %v963, %v959
    %v965 = vmul.f32 1.0, %v964
    %v966 = vrcp.pop %v542
    %v967 = vmul.f32 %v542, %v966
    %v968 = vsub.f32 1.0, %v967
    %v969 = vmul.f32 %v966, %v968
    %v970 = vadd.f32 %v966, %v969
    %vm971 = vweird.f32 %v542
    %vm972 = vweird.f32 %v966
    %vm973 = vmor %vm971, %vm972
    %v974 = vsel %vm973, %v966, %v970
    %v975 = vand.u32 2147483647, %v542
    %vm976 = vcmp.eq.f32.partialorder %v975, 8.507059e+37
    %v977 = vand.u32 %v542, 2147483648
    %v978 = vor.u32 1.1754944e-38, %v977
    %v979 = vsel %vm976, %v978, %v974
    %v980 = vmul.f32 1.0, %v979
    %v981 = vrcp.pop %v543
    %v982 = vmul.f32 %v543, %v981
    %v983 = vsub.f32 1.0, %v982
    %v984 = vmul.f32 %v981, %v983
    %v985 = vadd.f32 %v981, %v984
    %vm986 = vweird.f32 %v543
    %vm987 = vweird.f32 %v981
    %vm988 = vmor %vm986, %vm987
    %v989 = vsel %vm988, %v981, %v985
    %v990 = vand.u32 2147483647, %v543
    %vm991 = vcmp.eq.f32.partialorder %v990, 8.507059e+37
    %v992 = vand.u32 %v543, 2147483648
    %v993 = vor.u32 1.1754944e-38, %v992
    %v994 = vsel %vm991, %v993, %v989
    %v995 = vmul.f32 1.0, %v994
    %v996 = vrcp.pop %v544
    %v997 = vmul.f32 %v544, %v996
    %v998 = vsub.f32 1.0, %v997
    %v999 = vmul.f32 %v996, %v998
    %v1000 = vadd.f32 %v996, %v999
    %vm1001 = vweird.f32 %v544
    %vm1002 = vweird.f32 %v996
    %vm1003 = vmor %vm1001, %vm1002
    %v1004 = vsel %vm1003, %v996, %v1000
    %v1005 = vand.u32 2147483647, %v544
    %vm1006 = vcmp.eq.f32.partialorder %v1005, 8.507059e+37
    %v1007 = vand.u32 %v544, 2147483648
    %v1008 = vor.u32 1.1754944e-38, %v1007
    %v1009 = vsel %vm1006, %v1008, %v1004
    %v1010 = vmul.f32 1.0, %v1009
    %v1011 = vrcp.pop %v545
    %v1012 = vmul.f32 %v545, %v1011
    %v1013 = vsub.f32 1.0, %v1012
    %v1014 = vmul.f32 %v1011, %v1013
    %v1015 = vadd.f32 %v1011, %v1014
    %vm1016 = vweird.f32 %v545
    %vm1017 = vweird.f32 %v1011
    %vm1018 = vmor %vm1016, %vm1017
    %v1019 = vsel %vm1018, %v1011, %v1015
    %v1020 = vand.u32 2147483647, %v545
    %vm1021 = vcmp.eq.f32.partialorder %v1020, 8.507059e+37
    %v1022 = vand.u32 %v545, 2147483648
    %v1023 = vor.u32 1.1754944e-38, %v1022
    %v1024 = vsel %vm1021, %v1023, %v1019
    %v1025 = vmul.f32 1.0, %v1024
    %v1026 = vmul.f32 %v386, %v560
    %v1027 = vmul.f32 %v387, %v575
    %v1028 = vmul.f32 %v388, %v590
    %v1029 = vmul.f32 %v389, %v605
    %v1030 = vmul.f32 %v390, %v620
    %v1031 = vmul.f32 %v391, %v635
    %v1032 = vmul.f32 %v392, %v650
    %v1033 = vmul.f32 %v393, %v665
    %v1034 = vmul.f32 %v394, %v680
    %v1035 = vmul.f32 %v395, %v695
    %v1036 = vmul.f32 %v396, %v710
    %v1037 = vmul.f32 %v397, %v725
    %v1038 = vmul.f32 %v398, %v740
    %v1039 = vmul.f32 %v399, %v755
    %v1040 = vmul.f32 %v400, %v770
    %v1041 = vmul.f32 %v401, %v785
    %v1042 = vmul.f32 %v402, %v800
    %v1043 = vmul.f32 %v403, %v815
    %v1044 = vmul.f32 %v404, %v830
    %v1045 = vmul.f32 %v405, %v845
    %v1046 = vmul.f32 %v406, %v860
    %v1047 = vmul.f32 %v407, %v875
    %v1048 = vmul.f32 %v408, %v890
    %v1049 = vmul.f32 %v409, %v905
    %v1050 = vmul.f32 %v410, %v920
    %v1051 = vmul.f32 %v411, %v935
    %v1052 = vmul.f32 %v412, %v950
    %v1053 = vmul.f32 %v413, %v965
    %v1054 = vmul.f32 %v414, %v980
    %v1055 = vmul.f32 %v415, %v995
    %v1056 = vmul.f32 %v416, %v1010
    %v1057 = vmul.f32 %v417, %v1025
    %v1058 = vld [vmem:[#allocation5] sm:$0xff]
    %v1059 = vld [vmem:[#allocation5 + $0x8] sm:$0xff]
    %v1060 = vld [vmem:[#allocation8] sm:$0xff]
    %v1061 = vld [vmem:[#allocation8 + $0x8] sm:$0xff]
    %v1062 = vld [vmem:[#allocation8 + $0x10] sm:$0xff]
    %v1063 = vld [vmem:[#allocation8 + $0x18] sm:$0xff]
    %v1064 = vld [vmem:[#allocation8 + $0x20] sm:$0xff]
    %v1065 = vld [vmem:[#allocation8 + $0x28] sm:$0xff]
    %v1066 = vld [vmem:[#allocation8 + $0x30] sm:$0xff]
    %v1067 = vld [vmem:[#allocation8 + $0x38] sm:$0xff]
    %v1068 = vld [vmem:[#allocation8 + $0x40] sm:$0xff]
    %v1069 = vld [vmem:[#allocation8 + $0x48] sm:$0xff]
    %v1070 = vld [vmem:[#allocation8 + $0x50] sm:$0xff]
    %v1071 = vld [vmem:[#allocation8 + $0x58] sm:$0xff]
    %v1072 = vld [vmem:[#allocation8 + $0x60] sm:$0xff]
    %v1073 = vld [vmem:[#allocation8 + $0x68] sm:$0xff]
    %v1074 = vld [vmem:[#allocation8 + $0x70] sm:$0xff]
    %v1075 = vld [vmem:[#allocation8 + $0x78] sm:$0xff]
    %v1076 = vld [vmem:[%s5] sm:$0x3]
    %v1078 = vperm.slane %v1076, 0
    %v1079 = vperm.slane %v1076, 1
    %vm1082 = vcmask 523264
    %v1084 = vsel %vm1082, %v1058, 0
    %v1087 = vsel %vm1082, %v1059, 0
    %1089 = vmatpush.msra.mxu0 0.0
    %1090 = vmatpush.msra.mxu0 0.0
    %1091 = vmatpush.msra.mxu0 0.0
    %1092 = vmatpush.msra.mxu0 0.0
    %1093 = vmatpush.msra.mxu0 0.0
    %1094 = vmatpush.msra.mxu0 0.0
    %1095 = vmatpush.msra.mxu0 0.0
    %1096 = vmatpush.msra.mxu0 0.0
    %1097 = vmatpush.msra.mxu0 %v1074
    %1098 = vmatpush.msra.mxu0 %v1072
    %1099 = vmatpush.msra.mxu0 %v1070
    %1100 = vmatpush.msra.mxu0 %v1068
    %1101 = vmatpush.msra.mxu0 %v1066
    %1102 = vmatpush.msra.mxu0 %v1064
    %1103 = vmatpush.msra.mxu0 %v1062
    %1104 = vmatpush.msra.mxu0 %v1060
    %1105 = vmatmul.f32.gmra.mxu0 %v1084
    %v1106 = vpop.f32.mrf.mxu0
    %v1107 = vadd.f32 %v1078, %v1106
    %1108 = vmatmul.f32.gmra.mxu0 %v1087
    %v1109 = vpop.f32.mrf.mxu0
    %v1110 = vadd.f32 %v1078, %v1109
    %1111 = vdwg.mxu0
    %1112 = vmatpush.msra.mxu0 0.0
    %1113 = vmatpush.msra.mxu0 0.0
    %1114 = vmatpush.msra.mxu0 0.0
    %1115 = vmatpush.msra.mxu0 0.0
    %1116 = vmatpush.msra.mxu0 0.0
    %1117 = vmatpush.msra.mxu0 0.0
    %1118 = vmatpush.msra.mxu0 0.0
    %1119 = vmatpush.msra.mxu0 0.0
    %1120 = vmatpush.msra.mxu0 %v1075
    %1121 = vmatpush.msra.mxu0 %v1073
    %1122 = vmatpush.msra.mxu0 %v1071
    %1123 = vmatpush.msra.mxu0 %v1069
    %1124 = vmatpush.msra.mxu0 %v1067
    %1125 = vmatpush.msra.mxu0 %v1065
    %1126 = vmatpush.msra.mxu0 %v1063
    %1127 = vmatpush.msra.mxu0 %v1061
    %1128 = vmatmul.f32.gmra.mxu0 %v1084
    %v1129 = vpop.f32.mrf.mxu0
    %v1130 = vadd.f32 %v1079, %v1129
    %1131 = vmatmul.f32.gmra.mxu0 %v1087
    %v1132 = vpop.f32.mrf.mxu0
    %v1133 = vadd.f32 %v1079, %v1132
    %1134 = vdwg.mxu0
    %v1135 = vtanh.pop %v1107
    %v1136 = vtanh.pop %v1110
    %v1137 = vxor.u32 %v1130, 2147483648
    %v1138 = vxor.u32 %v1133, 2147483648
    %v1139 = vmul.f32 %v1137, 1.442695
    %v1140 = vpow.pop %v1139
    %v1141 = vmul.f32 %v1138, 1.442695
    %v1142 = vpow.pop %v1141
    %v1143 = vadd.f32 %v1140, 1.0
    %v1144 = vadd.f32 %v1142, 1.0
    %v1145 = vrcp.pop %v1143
    %v1146 = vmul.f32 %v1143, %v1145
    %v1147 = vsub.f32 1.0, %v1146
    %v1148 = vmul.f32 %v1145, %v1147
    %v1149 = vadd.f32 %v1145, %v1148
    %vm1150 = vweird.f32 %v1143
    %vm1151 = vweird.f32 %v1145
    %vm1152 = vmor %vm1150, %vm1151
    %v1153 = vsel %vm1152, %v1145, %v1149
    %v1154 = vand.u32 2147483647, %v1143
    %vm1155 = vcmp.eq.f32.partialorder %v1154, 8.507059e+37
    %v1156 = vand.u32 %v1143, 2147483648
    %v1157 = vor.u32 1.1754944e-38, %v1156
    %v1158 = vsel %vm1155, %v1157, %v1153
    %v1159 = vmul.f32 1.0, %v1158
    %v1160 = vrcp.pop %v1144
    %v1161 = vmul.f32 %v1144, %v1160
    %v1162 = vsub.f32 1.0, %v1161
    %v1163 = vmul.f32 %v1160, %v1162
    %v1164 = vadd.f32 %v1160, %v1163
    %vm1165 = vweird.f32 %v1144
    %vm1166 = vweird.f32 %v1160
    %vm1167 = vmor %vm1165, %vm1166
    %v1168 = vsel %vm1167, %v1160, %v1164
    %v1169 = vand.u32 2147483647, %v1144
    %vm1170 = vcmp.eq.f32.partialorder %v1169, 8.507059e+37
    %v1171 = vand.u32 %v1144, 2147483648
    %v1172 = vor.u32 1.1754944e-38, %v1171
    %v1173 = vsel %vm1170, %v1172, %v1168
    %v1174 = vmul.f32 1.0, %v1173
    %v1175 = vmul.f32 %v1135, %v1159
    %v1176 = vmul.f32 %v1136, %v1174
    %v1177 = vld [vmem:[%s6] sm:$0x1]
    %v1179 = vperm.slane %v1177, 0
    %v1181 = vmul.f32 %v1175, %v1179
    %v1182 = vmul.f32 %v1176, %v1179
    %v1185 = vrot.slane %v1181, 1
    %v1186 = vrot.slane %v1181, 2
    %v1187 = vrot.slane %v1181, 3
    %v1188 = vrot.slane %v1181, 4
    %v1189 = vrot.slane %v1181, 5
    %v1190 = vrot.slane %v1181, 6
    %v1191 = vrot.slane %v1181, 7
    %v1192 = vrot.slane %v1182, 1
    %v1193 = vrot.slane %v1182, 2
    %v1194 = vrot.slane %v1182, 3
    %v1195 = vrot.slane %v1182, 4
    %v1196 = vrot.slane %v1182, 5
    %v1197 = vrot.slane %v1182, 6
    %v1198 = vrot.slane %v1182, 7
    %v1199 = vperm.slane %v1181, 0
    %v1200 = vperm.slane %v1185, 0
    %v1201 = vperm.slane %v1186, 0
    %v1202 = vperm.slane %v1187, 0
    %v1203 = vperm.slane %v1188, 0
    %v1204 = vperm.slane %v1189, 0
    %v1205 = vperm.slane %v1190, 0
    %v1206 = vperm.slane %v1191, 0
    %v1207 = vperm.slane %v1182, 0
    %v1208 = vperm.slane %v1192, 0
    %v1209 = vperm.slane %v1193, 0
    %v1210 = vperm.slane %v1194, 0
    %v1211 = vperm.slane %v1195, 0
    %v1212 = vperm.slane %v1196, 0
    %v1213 = vperm.slane %v1197, 0
    %v1214 = vperm.slane %v1198, 0
    %v1231 = vmul.f32 %v1026, %v1199
    %v1232 = vmul.f32 %v1027, %v1199
    %v1233 = vmul.f32 %v1028, %v1200
    %v1234 = vmul.f32 %v1029, %v1200
    %v1235 = vmul.f32 %v1030, %v1201
    %v1236 = vmul.f32 %v1031, %v1201
    %v1237 = vmul.f32 %v1032, %v1202
    %v1238 = vmul.f32 %v1033, %v1202
    %v1239 = vmul.f32 %v1034, %v1203
    %v1240 = vmul.f32 %v1035, %v1203
    %v1241 = vmul.f32 %v1036, %v1204
    %v1242 = vmul.f32 %v1037, %v1204
    %v1243 = vmul.f32 %v1038, %v1205
    %v1244 = vmul.f32 %v1039, %v1205
    %v1245 = vmul.f32 %v1040, %v1206
    %v1246 = vmul.f32 %v1041, %v1206
    %v1247 = vmul.f32 %v1042, %v1207
    %v1248 = vmul.f32 %v1043, %v1207
    %v1249 = vmul.f32 %v1044, %v1208
    %v1250 = vmul.f32 %v1045, %v1208
    %v1251 = vmul.f32 %v1046, %v1209
    %v1252 = vmul.f32 %v1047, %v1209
    %v1253 = vmul.f32 %v1048, %v1210
    %v1254 = vmul.f32 %v1049, %v1210
    %v1255 = vmul.f32 %v1050, %v1211
    %v1256 = vmul.f32 %v1051, %v1211
    %v1257 = vmul.f32 %v1052, %v1212
    %v1258 = vmul.f32 %v1053, %v1212
    %v1259 = vmul.f32 %v1054, %v1213
    %v1260 = vmul.f32 %v1055, %v1213
    %v1261 = vmul.f32 %v1056, %v1214
    %v1262 = vmul.f32 %v1057, %v1214
    %1263 = vadd.xlane.f32.xlu0 %v1231
    %v1264 = vpop.xlane.xlu0 %1263
    %1265 = vadd.xlane.f32.xlu0 %v1232
    %v1266 = vpop.xlane.xlu0 %1265
    %1267 = vadd.xlane.f32.xlu0 %v1233
    %v1268 = vpop.xlane.xlu0 %1267
    %1269 = vadd.xlane.f32.xlu0 %v1234
    %v1270 = vpop.xlane.xlu0 %1269
    %1271 = vadd.xlane.f32.xlu0 %v1235
    %v1272 = vpop.xlane.xlu0 %1271
    %1273 = vadd.xlane.f32.xlu0 %v1236
    %v1274 = vpop.xlane.xlu0 %1273
    %1275 = vadd.xlane.f32.xlu0 %v1237
    %v1276 = vpop.xlane.xlu0 %1275
    %1277 = vadd.xlane.f32.xlu0 %v1238
    %v1278 = vpop.xlane.xlu0 %1277
    %1279 = vadd.xlane.f32.xlu0 %v1239
    %v1280 = vpop.xlane.xlu0 %1279
    %1281 = vadd.xlane.f32.xlu0 %v1240
    %v1282 = vpop.xlane.xlu0 %1281
    %1283 = vadd.xlane.f32.xlu0 %v1241
    %v1284 = vpop.xlane.xlu0 %1283
    %1285 = vadd.xlane.f32.xlu0 %v1242
    %v1286 = vpop.xlane.xlu0 %1285
    %1287 = vadd.xlane.f32.xlu0 %v1243
    %v1288 = vpop.xlane.xlu0 %1287
    %1289 = vadd.xlane.f32.xlu0 %v1244
    %v1290 = vpop.xlane.xlu0 %1289
    %1291 = vadd.xlane.f32.xlu0 %v1245
    %v1292 = vpop.xlane.xlu0 %1291
    %1293 = vadd.xlane.f32.xlu0 %v1246
    %v1294 = vpop.xlane.xlu0 %1293
    %1295 = vadd.xlane.f32.xlu0 %v1247
    %v1296 = vpop.xlane.xlu0 %1295
    %1297 = vadd.xlane.f32.xlu0 %v1248
    %v1298 = vpop.xlane.xlu0 %1297
    %1299 = vadd.xlane.f32.xlu0 %v1249
    %v1300 = vpop.xlane.xlu0 %1299
    %1301 = vadd.xlane.f32.xlu0 %v1250
    %v1302 = vpop.xlane.xlu0 %1301
    %1303 = vadd.xlane.f32.xlu0 %v1251
    %v1304 = vpop.xlane.xlu0 %1303
    %1305 = vadd.xlane.f32.xlu0 %v1252
    %v1306 = vpop.xlane.xlu0 %1305
    %1307 = vadd.xlane.f32.xlu0 %v1253
    %v1308 = vpop.xlane.xlu0 %1307
    %1309 = vadd.xlane.f32.xlu0 %v1254
    %v1310 = vpop.xlane.xlu0 %1309
    %1311 = vadd.xlane.f32.xlu0 %v1255
    %v1312 = vpop.xlane.xlu0 %1311
    %1313 = vadd.xlane.f32.xlu0 %v1256
    %v1314 = vpop.xlane.xlu0 %1313
    %1315 = vadd.xlane.f32.xlu0 %v1257
    %v1316 = vpop.xlane.xlu0 %1315
    %1317 = vadd.xlane.f32.xlu0 %v1258
    %v1318 = vpop.xlane.xlu0 %1317
    %1319 = vadd.xlane.f32.xlu0 %v1259
    %v1320 = vpop.xlane.xlu0 %1319
    %1321 = vadd.xlane.f32.xlu0 %v1260
    %v1322 = vpop.xlane.xlu0 %1321
    %1323 = vadd.xlane.f32.xlu0 %v1261
    %v1324 = vpop.xlane.xlu0 %1323
    %1325 = vadd.xlane.f32.xlu0 %v1262
    %v1326 = vpop.xlane.xlu0 %1325
    %v1359 = vlaneseq
    %v1360 = vand.u32 %v1359, 127
    %v1361 = vperm.slane %v1264, %v1360
    %v1362 = vadd.s32 %v1360, 4294967288
    %v1363 = vperm.slane %v1266, %v1362
    %vm1364 = vcmask 130112
    %v1365 = vsel %vm1364, %v1363, %v1361
    %v1366 = vperm.slane %v1268, %v1360
    %v1367 = vperm.slane %v1270, %v1362
    %v1368 = vsel %vm1364, %v1367, %v1366
    %v1369 = vperm.slane %v1272, %v1360
    %v1370 = vperm.slane %v1274, %v1362
    %v1371 = vsel %vm1364, %v1370, %v1369
    %v1372 = vperm.slane %v1276, %v1360
    %v1373 = vperm.slane %v1278, %v1362
    %v1374 = vsel %vm1364, %v1373, %v1372
    %v1375 = vperm.slane %v1280, %v1360
    %v1376 = vperm.slane %v1282, %v1362
    %v1377 = vsel %vm1364, %v1376, %v1375
    %v1378 = vperm.slane %v1284, %v1360
    %v1379 = vperm.slane %v1286, %v1362
    %v1380 = vsel %vm1364, %v1379, %v1378
    %v1381 = vperm.slane %v1288, %v1360
    %v1382 = vperm.slane %v1290, %v1362
    %v1383 = vsel %vm1364, %v1382, %v1381
    %v1384 = vperm.slane %v1292, %v1360
    %v1385 = vperm.slane %v1294, %v1362
    %v1386 = vsel %vm1364, %v1385, %v1384
    %v1387 = vperm.slane %v1296, %v1360
    %v1388 = vperm.slane %v1298, %v1362
    %v1389 = vsel %vm1364, %v1388, %v1387
    %v1390 = vperm.slane %v1300, %v1360
    %v1391 = vperm.slane %v1302, %v1362
    %v1392 = vsel %vm1364, %v1391, %v1390
    %v1393 = vperm.slane %v1304, %v1360
    %v1394 = vperm.slane %v1306, %v1362
    %v1395 = vsel %vm1364, %v1394, %v1393
    %v1396 = vperm.slane %v1308, %v1360
    %v1397 = vperm.slane %v1310, %v1362
    %v1398 = vsel %vm1364, %v1397, %v1396
    %v1399 = vperm.slane %v1312, %v1360
    %v1400 = vperm.slane %v1314, %v1362
    %v1401 = vsel %vm1364, %v1400, %v1399
    %v1402 = vperm.slane %v1316, %v1360
    %v1403 = vperm.slane %v1318, %v1362
    %v1404 = vsel %vm1364, %v1403, %v1402
    %v1405 = vperm.slane %v1320, %v1360
    %v1406 = vperm.slane %v1322, %v1362
    %v1407 = vsel %vm1364, %v1406, %v1405
    %v1408 = vperm.slane %v1324, %v1360
    %v1409 = vperm.slane %v1326, %v1362
    %v1410 = vsel %vm1364, %v1409, %v1408
    %vm1411 = vcmask 1041409
    %v1412 = vsel %vm1411, %v1368, %v1365
    %vm1413 = vcmask 1042434
    %v1414 = vsel %vm1413, %v1371, %v1412
    %vm1415 = vcmask 1043459
    %v1416 = vsel %vm1415, %v1374, %v1414
    %vm1417 = vcmask 1044484
    %v1418 = vsel %vm1417, %v1377, %v1416
    %vm1419 = vcmask 1045509
    %v1420 = vsel %vm1419, %v1380, %v1418
    %vm1421 = vcmask 1046534
    %v1422 = vsel %vm1421, %v1383, %v1420
    %vm1423 = vcmask 1047559
    %v1424 = vsel %vm1423, %v1386, %v1422
    %v1425 = vsel %vm1411, %v1392, %v1389
    %v1426 = vsel %vm1413, %v1395, %v1425
    %v1427 = vsel %vm1415, %v1398, %v1426
    %v1428 = vsel %vm1417, %v1401, %v1427
    %v1429 = vsel %vm1419, %v1404, %v1428
    %v1430 = vsel %vm1421, %v1407, %v1429
    %v1431 = vsel %vm1423, %v1410, %v1430
    %vm1434 = vcmask 130048
    %v1435 = vsel %vm1434, %v1424, -inf
    %1436 = vmax.xlane.f32.xlu0 %v1435
    %v1437 = vpop.xlane.xlu0 %1436
    %v1438 = vsel %vm1434, %v1431, -inf
    %1439 = vmax.xlane.f32.xlu0 %v1438
    %v1440 = vpop.xlane.xlu0 %1439
    %v1443 = vperm.slane %v1437, 0
    %v1444 = vperm.slane %v1437, 1
    %v1445 = vperm.slane %v1437, 2
    %v1446 = vperm.slane %v1437, 3
    %v1447 = vperm.slane %v1437, 4
    %v1448 = vperm.slane %v1437, 5
    %v1449 = vperm.slane %v1437, 6
    %v1450 = vperm.slane %v1437, 7
    %v1451 = vperm.slane %v1440, 0
    %v1452 = vperm.slane %v1440, 1
    %v1453 = vperm.slane %v1440, 2
    %v1454 = vperm.slane %v1440, 3
    %v1455 = vperm.slane %v1440, 4
    %v1456 = vperm.slane %v1440, 5
    %v1457 = vperm.slane %v1440, 6
    %v1458 = vperm.slane %v1440, 7
    %v1475 = vsub.f32 %v1264, %v1443
    %v1476 = vsub.f32 %v1266, %v1443
    %v1477 = vsub.f32 %v1268, %v1444
    %v1478 = vsub.f32 %v1270, %v1444
    %v1479 = vsub.f32 %v1272, %v1445
    %v1480 = vsub.f32 %v1274, %v1445
    %v1481 = vsub.f32 %v1276, %v1446
    %v1482 = vsub.f32 %v1278, %v1446
    %v1483 = vsub.f32 %v1280, %v1447
    %v1484 = vsub.f32 %v1282, %v1447
    %v1485 = vsub.f32 %v1284, %v1448
    %v1486 = vsub.f32 %v1286, %v1448
    %v1487 = vsub.f32 %v1288, %v1449
    %v1488 = vsub.f32 %v1290, %v1449
    %v1489 = vsub.f32 %v1292, %v1450
    %v1490 = vsub.f32 %v1294, %v1450
    %v1491 = vsub.f32 %v1296, %v1451
    %v1492 = vsub.f32 %v1298, %v1451
    %v1493 = vsub.f32 %v1300, %v1452
    %v1494 = vsub.f32 %v1302, %v1452
    %v1495 = vsub.f32 %v1304, %v1453
    %v1496 = vsub.f32 %v1306, %v1453
    %v1497 = vsub.f32 %v1308, %v1454
    %v1498 = vsub.f32 %v1310, %v1454
    %v1499 = vsub.f32 %v1312, %v1455
    %v1500 = vsub.f32 %v1314, %v1455
    %v1501 = vsub.f32 %v1316, %v1456
    %v1502 = vsub.f32 %v1318, %v1456
    %v1503 = vsub.f32 %v1320, %v1457
    %v1504 = vsub.f32 %v1322, %v1457
    %v1505 = vsub.f32 %v1324, %v1458
    %v1506 = vsub.f32 %v1326, %v1458
    %v1507 = vmul.f32 %v1475, 1.442695
    %v1508 = vpow.pop %v1507
    %v1509 = vmul.f32 %v1476, 1.442695
    %v1510 = vpow.pop %v1509
    %v1511 = vmul.f32 %v1477, 1.442695
    %v1512 = vpow.pop %v1511
    %v1513 = vmul.f32 %v1478, 1.442695
    %v1514 = vpow.pop %v1513
    %v1515 = vmul.f32 %v1479, 1.442695
    %v1516 = vpow.pop %v1515
    %v1517 = vmul.f32 %v1480, 1.442695
    %v1518 = vpow.pop %v1517
    %v1519 = vmul.f32 %v1481, 1.442695
    %v1520 = vpow.pop %v1519
    %v1521 = vmul.f32 %v1482, 1.442695
    %v1522 = vpow.pop %v1521
    %v1523 = vmul.f32 %v1483, 1.442695
    %v1524 = vpow.pop %v1523
    %v1525 = vmul.f32 %v1484, 1.442695
    %v1526 = vpow.pop %v1525
    %v1527 = vmul.f32 %v1485, 1.442695
    %v1528 = vpow.pop %v1527
    %v1529 = vmul.f32 %v1486, 1.442695
    %v1530 = vpow.pop %v1529
    %v1531 = vmul.f32 %v1487, 1.442695
    %v1532 = vpow.pop %v1531
    %v1533 = vmul.f32 %v1488, 1.442695
    %v1534 = vpow.pop %v1533
    %v1535 = vmul.f32 %v1489, 1.442695
    %v1536 = vpow.pop %v1535
    %v1537 = vmul.f32 %v1490, 1.442695
    %v1538 = vpow.pop %v1537
    %v1539 = vmul.f32 %v1491, 1.442695
    %v1540 = vpow.pop %v1539
    %v1541 = vmul.f32 %v1492, 1.442695
    %v1542 = vpow.pop %v1541
    %v1543 = vmul.f32 %v1493, 1.442695
    %v1544 = vpow.pop %v1543
    %v1545 = vmul.f32 %v1494, 1.442695
    %v1546 = vpow.pop %v1545
    %v1547 = vmul.f32 %v1495, 1.442695
    %v1548 = vpow.pop %v1547
    %v1549 = vmul.f32 %v1496, 1.442695
    %v1550 = vpow.pop %v1549
    %v1551 = vmul.f32 %v1497, 1.442695
    %v1552 = vpow.pop %v1551
    %v1553 = vmul.f32 %v1498, 1.442695
    %v1554 = vpow.pop %v1553
    %v1555 = vmul.f32 %v1499, 1.442695
    %v1556 = vpow.pop %v1555
    %v1557 = vmul.f32 %v1500, 1.442695
    %v1558 = vpow.pop %v1557
    %v1559 = vmul.f32 %v1501, 1.442695
    %v1560 = vpow.pop %v1559
    %v1561 = vmul.f32 %v1502, 1.442695
    %v1562 = vpow.pop %v1561
    %v1563 = vmul.f32 %v1503, 1.442695
    %v1564 = vpow.pop %v1563
    %v1565 = vmul.f32 %v1504, 1.442695
    %v1566 = vpow.pop %v1565
    %v1567 = vmul.f32 %v1505, 1.442695
    %v1568 = vpow.pop %v1567
    %v1569 = vmul.f32 %v1506, 1.442695
    %v1570 = vpow.pop %v1569
    %1603 = vset.pattern.permute.xlu0 0
    %1604 = vperm.xlu0 %1603, %v1508
    %v1605 = vpop.permute.xlu0 %1604
    %1606 = vset.pattern.permute.xlu0 0
    %1607 = vperm.xlu0 %1606, %v1510
    %v1608 = vpop.permute.xlu0 %1607
    %1609 = vset.pattern.permute.xlu0 0
    %1610 = vperm.xlu0 %1609, %v1512
    %v1611 = vpop.permute.xlu0 %1610
    %1612 = vset.pattern.permute.xlu0 0
    %1613 = vperm.xlu0 %1612, %v1514
    %v1614 = vpop.permute.xlu0 %1613
    %1615 = vset.pattern.permute.xlu0 0
    %1616 = vperm.xlu0 %1615, %v1516
    %v1617 = vpop.permute.xlu0 %1616
    %1618 = vset.pattern.permute.xlu0 0
    %1619 = vperm.xlu0 %1618, %v1518
    %v1620 = vpop.permute.xlu0 %1619
    %1621 = vset.pattern.permute.xlu0 0
    %1622 = vperm.xlu0 %1621, %v1520
    %v1623 = vpop.permute.xlu0 %1622
    %1624 = vset.pattern.permute.xlu0 0
    %1625 = vperm.xlu0 %1624, %v1522
    %v1626 = vpop.permute.xlu0 %1625
    %1627 = vset.pattern.permute.xlu0 0
    %1628 = vperm.xlu0 %1627, %v1524
    %v1629 = vpop.permute.xlu0 %1628
    %1630 = vset.pattern.permute.xlu0 0
    %1631 = vperm.xlu0 %1630, %v1526
    %v1632 = vpop.permute.xlu0 %1631
    %1633 = vset.pattern.permute.xlu0 0
    %1634 = vperm.xlu0 %1633, %v1528
    %v1635 = vpop.permute.xlu0 %1634
    %1636 = vset.pattern.permute.xlu0 0
    %1637 = vperm.xlu0 %1636, %v1530
    %v1638 = vpop.permute.xlu0 %1637
    %1639 = vset.pattern.permute.xlu0 0
    %1640 = vperm.xlu0 %1639, %v1532
    %v1641 = vpop.permute.xlu0 %1640
    %1642 = vset.pattern.permute.xlu0 0
    %1643 = vperm.xlu0 %1642, %v1534
    %v1644 = vpop.permute.xlu0 %1643
    %1645 = vset.pattern.permute.xlu0 0
    %1646 = vperm.xlu0 %1645, %v1536
    %v1647 = vpop.permute.xlu0 %1646
    %1648 = vset.pattern.permute.xlu0 0
    %1649 = vperm.xlu0 %1648, %v1538
    %v1650 = vpop.permute.xlu0 %1649
    %1651 = vset.pattern.permute.xlu0 0
    %1652 = vperm.xlu0 %1651, %v1540
    %v1653 = vpop.permute.xlu0 %1652
    %1654 = vset.pattern.permute.xlu0 0
    %1655 = vperm.xlu0 %1654, %v1542
    %v1656 = vpop.permute.xlu0 %1655
    %1657 = vset.pattern.permute.xlu0 0
    %1658 = vperm.xlu0 %1657, %v1544
    %v1659 = vpop.permute.xlu0 %1658
    %1660 = vset.pattern.permute.xlu0 0
    %1661 = vperm.xlu0 %1660, %v1546
    %v1662 = vpop.permute.xlu0 %1661
    %1663 = vset.pattern.permute.xlu0 0
    %1664 = vperm.xlu0 %1663, %v1548
    %v1665 = vpop.permute.xlu0 %1664
    %1666 = vset.pattern.permute.xlu0 0
    %1667 = vperm.xlu0 %1666, %v1550
    %v1668 = vpop.permute.xlu0 %1667
    %1669 = vset.pattern.permute.xlu0 0
    %1670 = vperm.xlu0 %1669, %v1552
    %v1671 = vpop.permute.xlu0 %1670
    %1672 = vset.pattern.permute.xlu0 0
    %1673 = vperm.xlu0 %1672, %v1554
    %v1674 = vpop.permute.xlu0 %1673
    %1675 = vset.pattern.permute.xlu0 0
    %1676 = vperm.xlu0 %1675, %v1556
    %v1677 = vpop.permute.xlu0 %1676
    %1678 = vset.pattern.permute.xlu0 0
    %1679 = vperm.xlu0 %1678, %v1558
    %v1680 = vpop.permute.xlu0 %1679
    %1681 = vset.pattern.permute.xlu0 0
    %1682 = vperm.xlu0 %1681, %v1560
    %v1683 = vpop.permute.xlu0 %1682
    %1684 = vset.pattern.permute.xlu0 0
    %1685 = vperm.xlu0 %1684, %v1562
    %v1686 = vpop.permute.xlu0 %1685
    %1687 = vset.pattern.permute.xlu0 0
    %1688 = vperm.xlu0 %1687, %v1564
    %v1689 = vpop.permute.xlu0 %1688
    %1690 = vset.pattern.permute.xlu0 0
    %1691 = vperm.xlu0 %1690, %v1566
    %v1692 = vpop.permute.xlu0 %1691
    %1693 = vset.pattern.permute.xlu0 0
    %1694 = vperm.xlu0 %1693, %v1568
    %v1695 = vpop.permute.xlu0 %1694
    %1696 = vset.pattern.permute.xlu0 0
    %1697 = vperm.xlu0 %1696, %v1570
    %v1698 = vpop.permute.xlu0 %1697
    %v1699 = vperm.slane %v1605, %v1360
    %v1700 = vperm.slane %v1608, %v1362
    %v1701 = vsel %vm1364, %v1700, %v1699
    %v1702 = vperm.slane %v1611, %v1360
    %v1703 = vperm.slane %v1614, %v1362
    %v1704 = vsel %vm1364, %v1703, %v1702
    %v1705 = vperm.slane %v1617, %v1360
    %v1706 = vperm.slane %v1620, %v1362
    %v1707 = vsel %vm1364, %v1706, %v1705
    %v1708 = vperm.slane %v1623, %v1360
    %v1709 = vperm.slane %v1626, %v1362
    %v1710 = vsel %vm1364, %v1709, %v1708
    %v1711 = vperm.slane %v1629, %v1360
    %v1712 = vperm.slane %v1632, %v1362
    %v1713 = vsel %vm1364, %v1712, %v1711
    %v1714 = vperm.slane %v1635, %v1360
    %v1715 = vperm.slane %v1638, %v1362
    %v1716 = vsel %vm1364, %v1715, %v1714
    %v1717 = vperm.slane %v1641, %v1360
    %v1718 = vperm.slane %v1644, %v1362
    %v1719 = vsel %vm1364, %v1718, %v1717
    %v1720 = vperm.slane %v1647, %v1360
    %v1721 = vperm.slane %v1650, %v1362
    %v1722 = vsel %vm1364, %v1721, %v1720
    %v1723 = vperm.slane %v1653, %v1360
    %v1724 = vperm.slane %v1656, %v1362
    %v1725 = vsel %vm1364, %v1724, %v1723
    %v1726 = vperm.slane %v1659, %v1360
    %v1727 = vperm.slane %v1662, %v1362
    %v1728 = vsel %vm1364, %v1727, %v1726
    %v1729 = vperm.slane %v1665, %v1360
    %v1730 = vperm.slane %v1668, %v1362
    %v1731 = vsel %vm1364, %v1730, %v1729
    %v1732 = vperm.slane %v1671, %v1360
    %v1733 = vperm.slane %v1674, %v1362
    %v1734 = vsel %vm1364, %v1733, %v1732
    %v1735 = vperm.slane %v1677, %v1360
    %v1736 = vperm.slane %v1680, %v1362
    %v1737 = vsel %vm1364, %v1736, %v1735
    %v1738 = vperm.slane %v1683, %v1360
    %v1739 = vperm.slane %v1686, %v1362
    %v1740 = vsel %vm1364, %v1739, %v1738
    %v1741 = vperm.slane %v1689, %v1360
    %v1742 = vperm.slane %v1692, %v1362
    %v1743 = vsel %vm1364, %v1742, %v1741
    %v1744 = vperm.slane %v1695, %v1360
    %v1745 = vperm.slane %v1698, %v1362
    %v1746 = vsel %vm1364, %v1745, %v1744
    %v1747 = vsel %vm1411, %v1704, %v1701
    %v1748 = vsel %vm1413, %v1707, %v1747
    %v1749 = vsel %vm1415, %v1710, %v1748
    %v1750 = vsel %vm1417, %v1713, %v1749
    %v1751 = vsel %vm1419, %v1716, %v1750
    %v1752 = vsel %vm1421, %v1719, %v1751
    %v1753 = vsel %vm1423, %v1722, %v1752
    %v1754 = vsel %vm1411, %v1728, %v1725
    %v1755 = vsel %vm1413, %v1731, %v1754
    %v1756 = vsel %vm1415, %v1734, %v1755
    %v1757 = vsel %vm1417, %v1737, %v1756
    %v1758 = vsel %vm1419, %v1740, %v1757
    %v1759 = vsel %vm1421, %v1743, %v1758
    %v1760 = vsel %vm1423, %v1746, %v1759
    %v1763 = vsel %vm1434, %v1753, 0.0
    %1764 = vadd.xlane.f32.xlu0 %v1763
    %v1765 = vpop.xlane.xlu0 %1764
    %v1766 = vsel %vm1434, %v1760, 0.0
    %1767 = vadd.xlane.f32.xlu0 %v1766
    %v1768 = vpop.xlane.xlu0 %1767
    %v1771 = vperm.slane %v1765, 0
    %v1772 = vperm.slane %v1765, 1
    %v1773 = vperm.slane %v1765, 2
    %v1774 = vperm.slane %v1765, 3
    %v1775 = vperm.slane %v1765, 4
    %v1776 = vperm.slane %v1765, 5
    %v1777 = vperm.slane %v1765, 6
    %v1778 = vperm.slane %v1765, 7
    %v1779 = vperm.slane %v1768, 0
    %v1780 = vperm.slane %v1768, 1
    %v1781 = vperm.slane %v1768, 2
    %v1782 = vperm.slane %v1768, 3
    %v1783 = vperm.slane %v1768, 4
    %v1784 = vperm.slane %v1768, 5
    %v1785 = vperm.slane %v1768, 6
    %v1786 = vperm.slane %v1768, 7
    %v1803 = vrcp.pop %v1771
    %v1804 = vmul.f32 %v1771, %v1803
    %v1805 = vsub.f32 1.0, %v1804
    %v1806 = vmul.f32 %v1803, %v1805
    %v1807 = vadd.f32 %v1803, %v1806
    %vm1808 = vweird.f32 %v1771
    %vm1809 = vweird.f32 %v1803
    %vm1810 = vmor %vm1808, %vm1809
    %v1811 = vsel %vm1810, %v1803, %v1807
    %v1812 = vand.u32 2147483647, %v1771
    %vm1813 = vcmp.eq.f32.partialorder %v1812, 8.507059e+37
    %v1814 = vand.u32 %v1771, 2147483648
    %v1815 = vor.u32 1.1754944e-38, %v1814
    %v1816 = vsel %vm1813, %v1815, %v1811
    %v1817 = vmul.f32 %v1508, %v1816
    %v1818 = vmul.f32 %v1510, %v1816
    %v1819 = vrcp.pop %v1772
    %v1820 = vmul.f32 %v1772, %v1819
    %v1821 = vsub.f32 1.0, %v1820
    %v1822 = vmul.f32 %v1819, %v1821
    %v1823 = vadd.f32 %v1819, %v1822
    %vm1824 = vweird.f32 %v1772
    %vm1825 = vweird.f32 %v1819
    %vm1826 = vmor %vm1824, %vm1825
    %v1827 = vsel %vm1826, %v1819, %v1823
    %v1828 = vand.u32 2147483647, %v1772
    %vm1829 = vcmp.eq.f32.partialorder %v1828, 8.507059e+37
    %v1830 = vand.u32 %v1772, 2147483648
    %v1831 = vor.u32 1.1754944e-38, %v1830
    %v1832 = vsel %vm1829, %v1831, %v1827
    %v1833 = vmul.f32 %v1512, %v1832
    %v1834 = vmul.f32 %v1514, %v1832
    %v1835 = vrcp.pop %v1773
    %v1836 = vmul.f32 %v1773, %v1835
    %v1837 = vsub.f32 1.0, %v1836
    %v1838 = vmul.f32 %v1835, %v1837
    %v1839 = vadd.f32 %v1835, %v1838
    %vm1840 = vweird.f32 %v1773
    %vm1841 = vweird.f32 %v1835
    %vm1842 = vmor %vm1840, %vm1841
    %v1843 = vsel %vm1842, %v1835, %v1839
    %v1844 = vand.u32 2147483647, %v1773
    %vm1845 = vcmp.eq.f32.partialorder %v1844, 8.507059e+37
    %v1846 = vand.u32 %v1773, 2147483648
    %v1847 = vor.u32 1.1754944e-38, %v1846
    %v1848 = vsel %vm1845, %v1847, %v1843
    %v1849 = vmul.f32 %v1516, %v1848
    %v1850 = vmul.f32 %v1518, %v1848
    %v1851 = vrcp.pop %v1774
    %v1852 = vmul.f32 %v1774, %v1851
    %v1853 = vsub.f32 1.0, %v1852
    %v1854 = vmul.f32 %v1851, %v1853
    %v1855 = vadd.f32 %v1851, %v1854
    %vm1856 = vweird.f32 %v1774
    %vm1857 = vweird.f32 %v1851
    %vm1858 = vmor %vm1856, %vm1857
    %v1859 = vsel %vm1858, %v1851, %v1855
    %v1860 = vand.u32 2147483647, %v1774
    %vm1861 = vcmp.eq.f32.partialorder %v1860, 8.507059e+37
    %v1862 = vand.u32 %v1774, 2147483648
    %v1863 = vor.u32 1.1754944e-38, %v1862
    %v1864 = vsel %vm1861, %v1863, %v1859
    %v1865 = vmul.f32 %v1520, %v1864
    %v1866 = vmul.f32 %v1522, %v1864
    %v1867 = vrcp.pop %v1775
    %v1868 = vmul.f32 %v1775, %v1867
    %v1869 = vsub.f32 1.0, %v1868
    %v1870 = vmul.f32 %v1867, %v1869
    %v1871 = vadd.f32 %v1867, %v1870
    %vm1872 = vweird.f32 %v1775
    %vm1873 = vweird.f32 %v1867
    %vm1874 = vmor %vm1872, %vm1873
    %v1875 = vsel %vm1874, %v1867, %v1871
    %v1876 = vand.u32 2147483647, %v1775
    %vm1877 = vcmp.eq.f32.partialorder %v1876, 8.507059e+37
    %v1878 = vand.u32 %v1775, 2147483648
    %v1879 = vor.u32 1.1754944e-38, %v1878
    %v1880 = vsel %vm1877, %v1879, %v1875
    %v1881 = vmul.f32 %v1524, %v1880
    %v1882 = vmul.f32 %v1526, %v1880
    %v1883 = vrcp.pop %v1776
    %v1884 = vmul.f32 %v1776, %v1883
    %v1885 = vsub.f32 1.0, %v1884
    %v1886 = vmul.f32 %v1883, %v1885
    %v1887 = vadd.f32 %v1883, %v1886
    %vm1888 = vweird.f32 %v1776
    %vm1889 = vweird.f32 %v1883
    %vm1890 = vmor %vm1888, %vm1889
    %v1891 = vsel %vm1890, %v1883, %v1887
    %v1892 = vand.u32 2147483647, %v1776
    %vm1893 = vcmp.eq.f32.partialorder %v1892, 8.507059e+37
    %v1894 = vand.u32 %v1776, 2147483648
    %v1895 = vor.u32 1.1754944e-38, %v1894
    %v1896 = vsel %vm1893, %v1895, %v1891
    %v1897 = vmul.f32 %v1528, %v1896
    %v1898 = vmul.f32 %v1530, %v1896
    %v1899 = vrcp.pop %v1777
    %v1900 = vmul.f32 %v1777, %v1899
    %v1901 = vsub.f32 1.0, %v1900
    %v1902 = vmul.f32 %v1899, %v1901
    %v1903 = vadd.f32 %v1899, %v1902
    %vm1904 = vweird.f32 %v1777
    %vm1905 = vweird.f32 %v1899
    %vm1906 = vmor %vm1904, %vm1905
    %v1907 = vsel %vm1906, %v1899, %v1903
    %v1908 = vand.u32 2147483647, %v1777
    %vm1909 = vcmp.eq.f32.partialorder %v1908, 8.507059e+37
    %v1910 = vand.u32 %v1777, 2147483648
    %v1911 = vor.u32 1.1754944e-38, %v1910
    %v1912 = vsel %vm1909, %v1911, %v1907
    %v1913 = vmul.f32 %v1532, %v1912
    %v1914 = vmul.f32 %v1534, %v1912
    %v1915 = vrcp.pop %v1778
    %v1916 = vmul.f32 %v1778, %v1915
    %v1917 = vsub.f32 1.0, %v1916
    %v1918 = vmul.f32 %v1915, %v1917
    %v1919 = vadd.f32 %v1915, %v1918
    %vm1920 = vweird.f32 %v1778
    %vm1921 = vweird.f32 %v1915
    %vm1922 = vmor %vm1920, %vm1921
    %v1923 = vsel %vm1922, %v1915, %v1919
    %v1924 = vand.u32 2147483647, %v1778
    %vm1925 = vcmp.eq.f32.partialorder %v1924, 8.507059e+37
    %v1926 = vand.u32 %v1778, 2147483648
    %v1927 = vor.u32 1.1754944e-38, %v1926
    %v1928 = vsel %vm1925, %v1927, %v1923
    %v1929 = vmul.f32 %v1536, %v1928
    %v1930 = vmul.f32 %v1538, %v1928
    %v1931 = vrcp.pop %v1779
    %v1932 = vmul.f32 %v1779, %v1931
    %v1933 = vsub.f32 1.0, %v1932
    %v1934 = vmul.f32 %v1931, %v1933
    %v1935 = vadd.f32 %v1931, %v1934
    %vm1936 = vweird.f32 %v1779
    %vm1937 = vweird.f32 %v1931
    %vm1938 = vmor %vm1936, %vm1937
    %v1939 = vsel %vm1938, %v1931, %v1935
    %v1940 = vand.u32 2147483647, %v1779
    %vm1941 = vcmp.eq.f32.partialorder %v1940, 8.507059e+37
    %v1942 = vand.u32 %v1779, 2147483648
    %v1943 = vor.u32 1.1754944e-38, %v1942
    %v1944 = vsel %vm1941, %v1943, %v1939
    %v1945 = vmul.f32 %v1540, %v1944
    %v1946 = vmul.f32 %v1542, %v1944
    %v1947 = vrcp.pop %v1780
    %v1948 = vmul.f32 %v1780, %v1947
    %v1949 = vsub.f32 1.0, %v1948
    %v1950 = vmul.f32 %v1947, %v1949
    %v1951 = vadd.f32 %v1947, %v1950
    %vm1952 = vweird.f32 %v1780
    %vm1953 = vweird.f32 %v1947
    %vm1954 = vmor %vm1952, %vm1953
    %v1955 = vsel %vm1954, %v1947, %v1951
    %v1956 = vand.u32 2147483647, %v1780
    %vm1957 = vcmp.eq.f32.partialorder %v1956, 8.507059e+37
    %v1958 = vand.u32 %v1780, 2147483648
    %v1959 = vor.u32 1.1754944e-38, %v1958
    %v1960 = vsel %vm1957, %v1959, %v1955
    %v1961 = vmul.f32 %v1544, %v1960
    %v1962 = vmul.f32 %v1546, %v1960
    %v1963 = vrcp.pop %v1781
    %v1964 = vmul.f32 %v1781, %v1963
    %v1965 = vsub.f32 1.0, %v1964
    %v1966 = vmul.f32 %v1963, %v1965
    %v1967 = vadd.f32 %v1963, %v1966
    %vm1968 = vweird.f32 %v1781
    %vm1969 = vweird.f32 %v1963
    %vm1970 = vmor %vm1968, %vm1969
    %v1971 = vsel %vm1970, %v1963, %v1967
    %v1972 = vand.u32 2147483647, %v1781
    %vm1973 = vcmp.eq.f32.partialorder %v1972, 8.507059e+37
    %v1974 = vand.u32 %v1781, 2147483648
    %v1975 = vor.u32 1.1754944e-38, %v1974
    %v1976 = vsel %vm1973, %v1975, %v1971
    %v1977 = vmul.f32 %v1548, %v1976
    %v1978 = vmul.f32 %v1550, %v1976
    %v1979 = vrcp.pop %v1782
    %v1980 = vmul.f32 %v1782, %v1979
    %v1981 = vsub.f32 1.0, %v1980
    %v1982 = vmul.f32 %v1979, %v1981
    %v1983 = vadd.f32 %v1979, %v1982
    %vm1984 = vweird.f32 %v1782
    %vm1985 = vweird.f32 %v1979
    %vm1986 = vmor %vm1984, %vm1985
    %v1987 = vsel %vm1986, %v1979, %v1983
    %v1988 = vand.u32 2147483647, %v1782
    %vm1989 = vcmp.eq.f32.partialorder %v1988, 8.507059e+37
    %v1990 = vand.u32 %v1782, 2147483648
    %v1991 = vor.u32 1.1754944e-38, %v1990
    %v1992 = vsel %vm1989, %v1991, %v1987
    %v1993 = vmul.f32 %v1552, %v1992
    %v1994 = vmul.f32 %v1554, %v1992
    %v1995 = vrcp.pop %v1783
    %v1996 = vmul.f32 %v1783, %v1995
    %v1997 = vsub.f32 1.0, %v1996
    %v1998 = vmul.f32 %v1995, %v1997
    %v1999 = vadd.f32 %v1995, %v1998
    %vm2000 = vweird.f32 %v1783
    %vm2001 = vweird.f32 %v1995
    %vm2002 = vmor %vm2000, %vm2001
    %v2003 = vsel %vm2002, %v1995, %v1999
    %v2004 = vand.u32 2147483647, %v1783
    %vm2005 = vcmp.eq.f32.partialorder %v2004, 8.507059e+37
    %v2006 = vand.u32 %v1783, 2147483648
    %v2007 = vor.u32 1.1754944e-38, %v2006
    %v2008 = vsel %vm2005, %v2007, %v2003
    %v2009 = vmul.f32 %v1556, %v2008
    %v2010 = vmul.f32 %v1558, %v2008
    %v2011 = vrcp.pop %v1784
    %v2012 = vmul.f32 %v1784, %v2011
    %v2013 = vsub.f32 1.0, %v2012
    %v2014 = vmul.f32 %v2011, %v2013
    %v2015 = vadd.f32 %v2011, %v2014
    %vm2016 = vweird.f32 %v1784
    %vm2017 = vweird.f32 %v2011
    %vm2018 = vmor %vm2016, %vm2017
    %v2019 = vsel %vm2018, %v2011, %v2015
    %v2020 = vand.u32 2147483647, %v1784
    %vm2021 = vcmp.eq.f32.partialorder %v2020, 8.507059e+37
    %v2022 = vand.u32 %v1784, 2147483648
    %v2023 = vor.u32 1.1754944e-38, %v2022
    %v2024 = vsel %vm2021, %v2023, %v2019
    %v2025 = vmul.f32 %v1560, %v2024
    %v2026 = vmul.f32 %v1562, %v2024
    %v2027 = vrcp.pop %v1785
    %v2028 = vmul.f32 %v1785, %v2027
    %v2029 = vsub.f32 1.0, %v2028
    %v2030 = vmul.f32 %v2027, %v2029
    %v2031 = vadd.f32 %v2027, %v2030
    %vm2032 = vweird.f32 %v1785
    %vm2033 = vweird.f32 %v2027
    %vm2034 = vmor %vm2032, %vm2033
    %v2035 = vsel %vm2034, %v2027, %v2031
    %v2036 = vand.u32 2147483647, %v1785
    %vm2037 = vcmp.eq.f32.partialorder %v2036, 8.507059e+37
    %v2038 = vand.u32 %v1785, 2147483648
    %v2039 = vor.u32 1.1754944e-38, %v2038
    %v2040 = vsel %vm2037, %v2039, %v2035
    %v2041 = vmul.f32 %v1564, %v2040
    %v2042 = vmul.f32 %v1566, %v2040
    %v2043 = vrcp.pop %v1786
    %v2044 = vmul.f32 %v1786, %v2043
    %v2045 = vsub.f32 1.0, %v2044
    %v2046 = vmul.f32 %v2043, %v2045
    %v2047 = vadd.f32 %v2043, %v2046
    %vm2048 = vweird.f32 %v1786
    %vm2049 = vweird.f32 %v2043
    %vm2050 = vmor %vm2048, %vm2049
    %v2051 = vsel %vm2050, %v2043, %v2047
    %v2052 = vand.u32 2147483647, %v1786
    %vm2053 = vcmp.eq.f32.partialorder %v2052, 8.507059e+37
    %v2054 = vand.u32 %v1786, 2147483648
    %v2055 = vor.u32 1.1754944e-38, %v2054
    %v2056 = vsel %vm2053, %v2055, %v2051
    %v2057 = vmul.f32 %v1568, %v2056
    %v2058 = vmul.f32 %v1570, %v2056
    %2091 = vset.pattern.permute.xlu0 0
    %2092 = vperm.xlu0 %2091, %v1817
    %v2093 = vpop.permute.xlu0 %2092
    %2094 = vset.pattern.permute.xlu0 0
    %2095 = vperm.xlu0 %2094, %v1818
    %v2096 = vpop.permute.xlu0 %2095
    %2097 = vset.pattern.permute.xlu0 0
    %2098 = vperm.xlu0 %2097, %v1833
    %v2099 = vpop.permute.xlu0 %2098
    %2100 = vset.pattern.permute.xlu0 0
    %2101 = vperm.xlu0 %2100, %v1834
    %v2102 = vpop.permute.xlu0 %2101
    %2103 = vset.pattern.permute.xlu0 0
    %2104 = vperm.xlu0 %2103, %v1849
    %v2105 = vpop.permute.xlu0 %2104
    %2106 = vset.pattern.permute.xlu0 0
    %2107 = vperm.xlu0 %2106, %v1850
    %v2108 = vpop.permute.xlu0 %2107
    %2109 = vset.pattern.permute.xlu0 0
    %2110 = vperm.xlu0 %2109, %v1865
    %v2111 = vpop.permute.xlu0 %2110
    %2112 = vset.pattern.permute.xlu0 0
    %2113 = vperm.xlu0 %2112, %v1866
    %v2114 = vpop.permute.xlu0 %2113
    %2115 = vset.pattern.permute.xlu0 0
    %2116 = vperm.xlu0 %2115, %v1881
    %v2117 = vpop.permute.xlu0 %2116
    %2118 = vset.pattern.permute.xlu0 0
    %2119 = vperm.xlu0 %2118, %v1882
    %v2120 = vpop.permute.xlu0 %2119
    %2121 = vset.pattern.permute.xlu0 0
    %2122 = vperm.xlu0 %2121, %v1897
    %v2123 = vpop.permute.xlu0 %2122
    %2124 = vset.pattern.permute.xlu0 0
    %2125 = vperm.xlu0 %2124, %v1898
    %v2126 = vpop.permute.xlu0 %2125
    %2127 = vset.pattern.permute.xlu0 0
    %2128 = vperm.xlu0 %2127, %v1913
    %v2129 = vpop.permute.xlu0 %2128
    %2130 = vset.pattern.permute.xlu0 0
    %2131 = vperm.xlu0 %2130, %v1914
    %v2132 = vpop.permute.xlu0 %2131
    %2133 = vset.pattern.permute.xlu0 0
    %2134 = vperm.xlu0 %2133, %v1929
    %v2135 = vpop.permute.xlu0 %2134
    %2136 = vset.pattern.permute.xlu0 0
    %2137 = vperm.xlu0 %2136, %v1930
    %v2138 = vpop.permute.xlu0 %2137
    %2139 = vset.pattern.permute.xlu0 0
    %2140 = vperm.xlu0 %2139, %v1945
    %v2141 = vpop.permute.xlu0 %2140
    %2142 = vset.pattern.permute.xlu0 0
    %2143 = vperm.xlu0 %2142, %v1946
    %v2144 = vpop.permute.xlu0 %2143
    %2145 = vset.pattern.permute.xlu0 0
    %2146 = vperm.xlu0 %2145, %v1961
    %v2147 = vpop.permute.xlu0 %2146
    %2148 = vset.pattern.permute.xlu0 0
    %2149 = vperm.xlu0 %2148, %v1962
    %v2150 = vpop.permute.xlu0 %2149
    %2151 = vset.pattern.permute.xlu0 0
    %2152 = vperm.xlu0 %2151, %v1977
    %v2153 = vpop.permute.xlu0 %2152
    %2154 = vset.pattern.permute.xlu0 0
    %2155 = vperm.xlu0 %2154, %v1978
    %v2156 = vpop.permute.xlu0 %2155
    %2157 = vset.pattern.permute.xlu0 0
    %2158 = vperm.xlu0 %2157, %v1993
    %v2159 = vpop.permute.xlu0 %2158
    %2160 = vset.pattern.permute.xlu0 0
    %2161 = vperm.xlu0 %2160, %v1994
    %v2162 = vpop.permute.xlu0 %2161
    %2163 = vset.pattern.permute.xlu0 0
    %2164 = vperm.xlu0 %2163, %v2009
    %v2165 = vpop.permute.xlu0 %2164
    %2166 = vset.pattern.permute.xlu0 0
    %2167 = vperm.xlu0 %2166, %v2010
    %v2168 = vpop.permute.xlu0 %2167
    %2169 = vset.pattern.permute.xlu0 0
    %2170 = vperm.xlu0 %2169, %v2025
    %v2171 = vpop.permute.xlu0 %2170
    %2172 = vset.pattern.permute.xlu0 0
    %2173 = vperm.xlu0 %2172, %v2026
    %v2174 = vpop.permute.xlu0 %2173
    %2175 = vset.pattern.permute.xlu0 0
    %2176 = vperm.xlu0 %2175, %v2041
    %v2177 = vpop.permute.xlu0 %2176
    %2178 = vset.pattern.permute.xlu0 0
    %2179 = vperm.xlu0 %2178, %v2042
    %v2180 = vpop.permute.xlu0 %2179
    %2181 = vset.pattern.permute.xlu0 0
    %2182 = vperm.xlu0 %2181, %v2057
    %v2183 = vpop.permute.xlu0 %2182
    %2184 = vset.pattern.permute.xlu0 0
    %2185 = vperm.xlu0 %2184, %v2058
    %v2186 = vpop.permute.xlu0 %2185
    %v2187 = vperm.slane %v2093, %v1360
    %v2188 = vperm.slane %v2096, %v1362
    %v2189 = vsel %vm1364, %v2188, %v2187
    %v2190 = vperm.slane %v2099, %v1360
    %v2191 = vperm.slane %v2102, %v1362
    %v2192 = vsel %vm1364, %v2191, %v2190
    %v2193 = vperm.slane %v2105, %v1360
    %v2194 = vperm.slane %v2108, %v1362
    %v2195 = vsel %vm1364, %v2194, %v2193
    %v2196 = vperm.slane %v2111, %v1360
    %v2197 = vperm.slane %v2114, %v1362
    %v2198 = vsel %vm1364, %v2197, %v2196
    %v2199 = vperm.slane %v2117, %v1360
    %v2200 = vperm.slane %v2120, %v1362
    %v2201 = vsel %vm1364, %v2200, %v2199
    %v2202 = vperm.slane %v2123, %v1360
    %v2203 = vperm.slane %v2126, %v1362
    %v2204 = vsel %vm1364, %v2203, %v2202
    %v2205 = vperm.slane %v2129, %v1360
    %v2206 = vperm.slane %v2132, %v1362
    %v2207 = vsel %vm1364, %v2206, %v2205
    %v2208 = vperm.slane %v2135, %v1360
    %v2209 = vperm.slane %v2138, %v1362
    %v2210 = vsel %vm1364, %v2209, %v2208
    %v2211 = vperm.slane %v2141, %v1360
    %v2212 = vperm.slane %v2144, %v1362
    %v2213 = vsel %vm1364, %v2212, %v2211
    %v2214 = vperm.slane %v2147, %v1360
    %v2215 = vperm.slane %v2150, %v1362
    %v2216 = vsel %vm1364, %v2215, %v2214
    %v2217 = vperm.slane %v2153, %v1360
    %v2218 = vperm.slane %v2156, %v1362
    %v2219 = vsel %vm1364, %v2218, %v2217
    %v2220 = vperm.slane %v2159, %v1360
    %v2221 = vperm.slane %v2162, %v1362
    %v2222 = vsel %vm1364, %v2221, %v2220
    %v2223 = vperm.slane %v2165, %v1360
    %v2224 = vperm.slane %v2168, %v1362
    %v2225 = vsel %vm1364, %v2224, %v2223
    %v2226 = vperm.slane %v2171, %v1360
    %v2227 = vperm.slane %v2174, %v1362
    %v2228 = vsel %vm1364, %v2227, %v2226
    %v2229 = vperm.slane %v2177, %v1360
    %v2230 = vperm.slane %v2180, %v1362
    %v2231 = vsel %vm1364, %v2230, %v2229
    %v2232 = vperm.slane %v2183, %v1360
    %v2233 = vperm.slane %v2186, %v1362
    %v2234 = vsel %vm1364, %v2233, %v2232
    %v2235 = vsel %vm1411, %v2192, %v2189
    %v2236 = vsel %vm1413, %v2195, %v2235
    %v2237 = vsel %vm1415, %v2198, %v2236
    %v2238 = vsel %vm1417, %v2201, %v2237
    %v2239 = vsel %vm1419, %v2204, %v2238
    %v2240 = vsel %vm1421, %v2207, %v2239
    %v2241 = vsel %vm1423, %v2210, %v2240
    %v2242 = vsel %vm1411, %v2216, %v2213
    %v2243 = vsel %vm1413, %v2219, %v2242
    %v2244 = vsel %vm1415, %v2222, %v2243
    %v2245 = vsel %vm1417, %v2225, %v2244
    %v2246 = vsel %vm1419, %v2228, %v2245
    %v2247 = vsel %vm1421, %v2231, %v2246
    %v2248 = vsel %vm1423, %v2234, %v2247
    %2251 = vst.msk [vmem:[#allocation10] sm:$0xff] %vm1434, %v2241
    %2252 = vst.msk [vmem:[#allocation10 + $0x8] sm:$0xff] %vm1434, %v2248
    // Predicated region
    $region46: #{tpu_custom_call.1} parent=1 // pred_check
      _
    $region47: #{tpu_custom_call.1} parent=1 // pred_check_branch
      %2254 = sbr.rel (0) target = $region49
    $region48: #{tpu_custom_call.1} parent=1 // pred_region
      %2256 = vsyncadd [#allocation4], 0
      %s2257 = sshll.u32 [#allocation10], 4
      %s2258 = int_to_ptr.vmem [resolvable:$true] %s2257
      %s2259 = sshll.u32 %s7, 4
      %s2260 = int_to_ptr.hbm [resolvable:$true] %s2259
      %2265 = dma.vmem_to_hbm [thread:$0]  %s2258, 256, %s2260, [#allocation4], 128, 128, 8
    $region49: #{tpu_custom_call.1} parent=1 // pred_fallthru
      _
    // Predicated region
    $region50: #{tpu_custom_call.1} parent=1 // pred_check
      _
    $region51: #{tpu_custom_call.1} parent=1 // pred_check_branch
      %2267 = sbr.rel (0) target = $region53
    $region52: #{tpu_custom_call.1} parent=1 // pred_region
      %2269 = dma.done [#allocation4], 256
    $region53: #{tpu_custom_call.1} parent=1 // pred_fallthru
      _
    %2270 = vsyncpa [#allocation3], 1
    %2271 = vsyncpa [#allocation6], 1
    %2272 = vsyncpa [#allocation9], 1
    %2273 = vsyncpa [#allocation4], 1

</llo_original>
